<compile_context>
chip_gen: v7x
topology: tpu7x:2x2x1
jax: 0.10.0
libtpu: 0.0.40
codegen_flags: <defaults>
</compile_context>

<pallas_src>
import jax
import jax.numpy as jnp
from jax.experimental import pallas as pl
from jax.experimental.pallas import tpu as pltpu


def _round_up(a, m):
    return ((a + m - 1) // m) * m


# ----------------------------------------------------------------------------
# Kernel
# ----------------------------------------------------------------------------
def _pynerf_mlp_kernel(
    # per-tile inputs
    x_ref, vd_ref,
    # fused layer 1: (density-L0 | feature_linear)
    w1_ref, b1_ref,
    # fused layer 2: blockdiag(wd1, wc0f) + padded view-dir weight
    w2_ref, b2_ref, wv_ref,
    # fused layer 3: wc1 (cols 0:H) | wd2 (col H)
    w3_ref, b3_ref,
    # layer 4: wc2 rgb head (cols 0:3), col 3 zero
    w4_ref, b4_ref,
    # per-tile output: [:, 0:3] = rgb, [:, 3] = sigma
    out_ref,
):
    cdt = w1_ref.dtype            # MXU operand dtype (bf16 or f32)
    H = w2_ref.shape[0] // 2      # hidden dim

    x = x_ref[...].astype(cdt)    # [tn, D]

    # ---- layer 1: [tn, D] @ [D, 2H]   (density hidden | features) ----------
    y = jnp.dot(x, w1_ref[...], preferred_element_type=jnp.float32) + b1_ref[...]
    y = jnp.maximum(y, 0.0)                                   # [tn, 2H] f32

    # ---- view-dir normalize (F.normalize, p=2, eps=1e-12) + K=3 FMAs -------
    vd = vd_ref[...].astype(jnp.float32)                      # [tn, 3]
    v0, v1, v2 = vd[:, 0:1], vd[:, 1:2], vd[:, 2:3]
    inv_n = jax.lax.rsqrt(jnp.maximum(v0 * v0 + v1 * v1 + v2 * v2, 1e-24))
    wv = wv_ref[...]                                          # [3, 2H] f32 (zeros on density half)
    vterm = ((v0 * inv_n) * wv[0:1, :]
             + (v1 * inv_n) * wv[1:2, :]
             + (v2 * inv_n) * wv[2:3, :])                     # [tn, 2H]

    # ---- layer 2: [tn, 2H] @ [2H, 2H]  blockdiag(wd1, wc0f) ----------------
    z = jnp.dot(y.astype(cdt), w2_ref[...], preferred_element_type=jnp.float32)
    z = jnp.maximum(z + vterm + b2_ref[...], 0.0)             # [tn, 2H] = [h1 | c0]

    # ---- layer 3: [tn, 2H] @ [2H, 2H]  (wc1 | wd2 column) ------------------
    z3 = jnp.dot(z.astype(cdt), w3_ref[...], preferred_element_type=jnp.float32) + b3_ref[...]
    z3 = jnp.maximum(z3, 0.0)                                 # [tn, 2H] = [c1 | sigma | 0...]
    sigma = z3[:, H:H + 1]                                    # [tn, 1] f32, already ReLU'd

    # ---- layer 4: [tn, 2H] @ [2H, 4]  rgb head ------------------------------
    out4 = jnp.dot(z3.astype(cdt), w4_ref[...], preferred_element_type=jnp.float32) + b4_ref[...]
    lane = jax.lax.broadcasted_iota(jnp.int32, out4.shape, 1)
    # lanes 0..2 = sigmoid(rgb_pre); lane 3 = sigma (kept in f32, no MXU round-trip)
    out_ref[...] = jnp.where(lane < 3, jax.nn.sigmoid(out4), sigma).astype(out_ref.dtype)


# ----------------------------------------------------------------------------
# Parameter packing (tiny, done once per call in the wrapper)
# ----------------------------------------------------------------------------
def _pack_params(params, compute_dtype):
    f32 = jnp.float32
    H = params["wd1"].shape[0]
    H2 = 2 * H

    # layer 1: concat(wd0, wf)
    w1 = jnp.concatenate([params["wd0"], params["wf"]], axis=1)            # [D, 2H]
    b1 = jnp.concatenate([params["bd0"], params["bf"]]).reshape(1, H2)

    # layer 2: blockdiag(wd1, wc0f); view-dir weight padded to [3, 2H]
    w2 = jnp.zeros((H2, H2), f32)
    w2 = w2.at[:H, :H].set(params["wd1"]).at[H:, H:].set(params["wc0f"])
    b2 = jnp.concatenate([params["bd1"], params["bc0"]]).reshape(1, H2)
    wv = jnp.zeros((3, H2), f32).at[:, H:].set(params["wc0v"])

    # layer 3: wc1 feeds cols 0:H (from the c0 half), wd2 feeds col H (from h1)
    w3 = jnp.zeros((H2, H2), f32)
    w3 = w3.at[H:, :H].set(params["wc1"]).at[:H, H].set(params["wd2"][:, 0])
    b3 = (jnp.zeros((H2,), f32)
          .at[:H].set(params["bc1"])
          .at[H].set(params["bd2"][0])).reshape(1, H2)

    # layer 4: wc2 from the c1 half; col 3 stays zero (sigma bypasses the MXU)
    w4 = jnp.zeros((H2, 4), f32).at[:H, :3].set(params["wc2"])
    b4 = jnp.zeros((4,), f32).at[:3].set(params["bc2"]).reshape(1, 4)

    cdt = compute_dtype
    return (w1.astype(cdt), b1.astype(f32),
            w2.astype(cdt), b2.astype(f32), wv.astype(f32),
            w3.astype(cdt), b3.astype(f32),
            w4.astype(cdt), b4.astype(f32))


# ----------------------------------------------------------------------------
# Wrapper
# ----------------------------------------------------------------------------
def pynerf_mlp_forward(encoded_pts, viewdirs, params, *, tile_n=2048,
                       compute_dtype=jnp.bfloat16):
    """Pallas forward of PyNeRFMLP.

    encoded_pts: [N, input_dim]  (f32 or bf16 — bf16 halves the main HBM read)
    viewdirs:    [N, 3]
    params:      dict of weights with [in, out] layout (see init_params)
    compute_dtype: MXU operand dtype (bf16 default; f32 for an exact path).
                   Accumulation and all VPU/EUP math stay f32.
    returns (rgb [N, 3] f32, sigma [N] f32)
    """
    N, D = encoded_pts.shape
    weight_args = _pack_params(params, compute_dtype)

    # ---- tiling: large tiles, no wrapper-side padding (Pallas masks the tail)
    tile = max(128, _round_up(int(tile_n), 128))
    tile = min(tile, _round_up(N, 128))
    num_tiles = pl.cdiv(N, tile)
    if num_tiles == 1 and N > 256:
        # give the "parallel" grid axis >= 2 steps so v7x can use both TCs
        tile = _round_up(pl.cdiv(N, 2), 128)
        num_tiles = pl.cdiv(N, tile)

    vd = viewdirs.astype(jnp.float32)

    def _resident(arr):
        # full-array block, same block every grid step -> stays VMEM-resident
        return pl.BlockSpec(arr.shape, lambda i: (0, 0))

    in_specs = ([pl.BlockSpec((tile, D), lambda i: (i, 0)),    # encoded_pts tile
                 pl.BlockSpec((tile, 3), lambda i: (i, 0))]    # viewdirs tile
                + [_resident(w) for w in weight_args])

    out = pl.pallas_call(
        _pynerf_mlp_kernel,
        out_shape=jax.ShapeDtypeStruct((N, 4), jnp.float32),
        grid_spec=pltpu.PrefetchScalarGridSpec(
            num_scalar_prefetch=0,
            grid=(num_tiles,),
            in_specs=in_specs,
            out_specs=pl.BlockSpec((tile, 4), lambda i: (i, 0)),
        ),
        compiler_params=pltpu.CompilerParams(
            dimension_semantics=("parallel",),
            vmem_limit_bytes=32 * 1024 * 1024,
        ),
    )(encoded_pts, vd, *weight_args)

    return out[:, :3], out[:, 3]


# ----------------------------------------------------------------------------
# Deterministic parameter init (PyTorch-Linear-style uniform ±1/sqrt(fan_in))
# ----------------------------------------------------------------------------
def init_params(key, input_dim, hidden_dim):
    def linear(key, fan_in, fan_out):
        kw, kb = jax.random.split(key)
        bound = 1.0 / jnp.sqrt(fan_in)
        w = jax.random.uniform(kw, (fan_in, fan_out), jnp.float32, -bound, bound)
        b = jax.random.uniform(kb, (fan_out,), jnp.float32, -bound, bound)
        return w, b

    keys = jax.random.split(key, 7)
    wd0, bd0 = linear(keys[0], input_dim, hidden_dim)
    wd1, bd1 = linear(keys[1], hidden_dim, hidden_dim)
    wd2, bd2 = linear(keys[2], hidden_dim, 1)
    wf, bf = linear(keys[3], input_dim, hidden_dim)
    wc0, bc0 = linear(keys[4], hidden_dim + 3, hidden_dim)
    wc0f, wc0v = wc0[:hidden_dim], wc0[hidden_dim:]
    wc1, bc1 = linear(keys[5], hidden_dim, hidden_dim)
    wc2, bc2 = linear(keys[6], hidden_dim, 3)
    return dict(
        wd0=wd0, bd0=bd0, wd1=wd1, bd1=bd1, wd2=wd2, bd2=bd2,
        wf=wf, bf=bf,
        wc0f=wc0f, wc0v=wc0v, bc0=bc0, wc1=wc1, bc1=bc1, wc2=wc2, bc2=bc2,
    )


# ----------------------------------------------------------------------------
# Pure-JAX reference (mirrors the PyTorch forward exactly)
# ----------------------------------------------------------------------------
def reference_forward(encoded_pts, viewdirs, p):
    x = encoded_pts.astype(jnp.float32)
    h = jax.nn.relu(x @ p["wd0"] + p["bd0"])
    h = jax.nn.relu(h @ p["wd1"] + p["bd1"])
    sigma = jax.nn.relu(h @ p["wd2"] + p["bd2"])
    feats = jax.nn.relu(x @ p["wf"] + p["bf"])
    norm = jnp.linalg.norm(viewdirs, axis=-1, keepdims=True)
    vdn = viewdirs / jnp.maximum(norm, 1e-12)
    ci = jnp.concatenate([feats, vdn], axis=-1)
    wc0 = jnp.concatenate([p["wc0f"], p["wc0v"]], axis=0)
    c = jax.nn.relu(ci @ wc0 + p["bc0"])
    c = jax.nn.relu(c @ p["wc1"] + p["bc1"])
    rgb = jax.nn.sigmoid(c @ p["wc2"] + p["bc2"])
    return rgb, sigma[:, 0]


if __name__ == "__main__":
    # Small deterministic problem; N intentionally NOT a multiple of the tile
    # to exercise the masked partial-block path (no wrapper-side padding).
    N, INPUT_DIM, HIDDEN = 250, 32, 64

    key = jax.random.PRNGKey(0)
    k_params, k_x, k_v = jax.random.split(key, 3)

    params = init_params(k_params, INPUT_DIM, HIDDEN)
    encoded_pts = jax.random.normal(k_x, (N, INPUT_DIM), jnp.float32)
    viewdirs = jax.random.normal(k_v, (N, 3), jnp.float32)

    rgb_ref, sigma_ref = reference_forward(encoded_pts, viewdirs, params)

    # ---- f32 MXU-operand path: tight check ----
    rgb, sigma = pynerf_mlp_forward(encoded_pts, viewdirs, params,
                                    compute_dtype=jnp.float32)
    rgb, sigma = jax.block_until_ready((rgb, sigma))
    assert rgb.shape == (N, 3) and sigma.shape == (N,)
    assert jnp.allclose(rgb, rgb_ref, atol=2e-4, rtol=2e-4)
    assert jnp.allclose(sigma, sigma_ref, atol=2e-4, rtol=2e-4)

    # ---- default path (bf16 MXU operands, f32 accumulation): relaxed check ----
    rgb_bf, sigma_bf = pynerf_mlp_forward(encoded_pts, viewdirs, params)
    rgb_bf, sigma_bf = jax.block_until_ready((rgb_bf, sigma_bf))
    assert rgb_bf.shape == (N, 3) and sigma_bf.shape == (N,)
    assert jnp.allclose(rgb_bf, rgb_ref, atol=1e-1, rtol=1e-1)
    assert jnp.allclose(sigma_bf, sigma_ref, atol=1e-1, rtol=1e-1)

    # ---- bf16 input stream as well (halves the dominant HBM read) ----
    rgb_b2, sigma_b2 = pynerf_mlp_forward(
        encoded_pts.astype(jnp.bfloat16), viewdirs, params)
    rgb_b2, sigma_b2 = jax.block_until_ready((rgb_b2, sigma_b2))
    assert jnp.allclose(rgb_b2, rgb_ref, atol=1e-1, rtol=1e-1)
    assert jnp.allclose(sigma_b2, sigma_ref, atol=1e-1, rtol=1e-1)

    # ---- larger N: exercises multi-tile grid + v7x two-step split + tail mask ----
    N2 = 520
    k_x2, k_v2 = jax.random.split(jax.random.PRNGKey(1), 2)
    x2 = jax.random.normal(k_x2, (N2, INPUT_DIM), jnp.float32)
    v2 = jax.random.normal(k_v2, (N2, 3), jnp.float32)
    rgb2_ref, sigma2_ref = reference_forward(x2, v2, params)
    rgb2, sigma2 = pynerf_mlp_forward(x2, v2, params, compute_dtype=jnp.float32)
    rgb2, sigma2 = jax.block_until_ready((rgb2, sigma2))
    assert rgb2.shape == (N2, 3) and sigma2.shape == (N2,)
    assert jnp.allclose(rgb2, rgb2_ref, atol=2e-4, rtol=2e-4)
    assert jnp.allclose(sigma2, sigma2_ref, atol=2e-4, rtol=2e-4)

    print("KERNEL_OK")
</pallas_src>

<mosaic_0001>
module attributes {stable_mosaic.version = 11 : i64} {
  func.func @_pynerf_mlp_kernel(%arg0: i32, %arg1: memref<256x32xf32, #tpu.memory_space<vmem>>, %arg2: memref<256x3xf32, #tpu.memory_space<vmem>>, %arg3: memref<32x128xf32, #tpu.memory_space<vmem>>, %arg4: memref<1x128xf32, #tpu.memory_space<vmem>>, %arg5: memref<128x128xf32, #tpu.memory_space<vmem>>, %arg6: memref<1x128xf32, #tpu.memory_space<vmem>>, %arg7: memref<3x128xf32, #tpu.memory_space<vmem>>, %arg8: memref<128x128xf32, #tpu.memory_space<vmem>>, %arg9: memref<1x128xf32, #tpu.memory_space<vmem>>, %arg10: memref<128x4xf32, #tpu.memory_space<vmem>>, %arg11: memref<1x4xf32, #tpu.memory_space<vmem>>, %arg12: memref<256x4xf32, #tpu.memory_space<vmem>>) attributes {dimension_semantics = [#tpu.dimension_semantics<parallel>], iteration_bounds = array<i64: 1>, scalar_prefetch = 0 : i64, scratch_operands = 0 : i64, tpu.core_type = #tpu.core_type<tc>, window_params = [{transform_indices = @transform_0, window_bounds = array<i64: 256, 32>}, {transform_indices = @transform_1, window_bounds = array<i64: 256, 3>}, {pipeline_mode = #tpu.pipeline_mode<synchronous>, transform_indices = @transform_2, window_bounds = array<i64: 32, 128>}, {pipeline_mode = #tpu.pipeline_mode<synchronous>, transform_indices = @transform_3, window_bounds = array<i64: 1, 128>}, {pipeline_mode = #tpu.pipeline_mode<synchronous>, transform_indices = @transform_4, window_bounds = array<i64: 128, 128>}, {pipeline_mode = #tpu.pipeline_mode<synchronous>, transform_indices = @transform_5, window_bounds = array<i64: 1, 128>}, {pipeline_mode = #tpu.pipeline_mode<synchronous>, transform_indices = @transform_6, window_bounds = array<i64: 3, 128>}, {pipeline_mode = #tpu.pipeline_mode<synchronous>, transform_indices = @transform_7, window_bounds = array<i64: 128, 128>}, {pipeline_mode = #tpu.pipeline_mode<synchronous>, transform_indices = @transform_8, window_bounds = array<i64: 1, 128>}, {pipeline_mode = #tpu.pipeline_mode<synchronous>, transform_indices = @transform_9, window_bounds = array<i64: 128, 4>}, {pipeline_mode = #tpu.pipeline_mode<synchronous>, transform_indices = @transform_10, window_bounds = array<i64: 1, 4>}, {transform_indices = @transform_11, window_bounds = array<i64: 256, 4>}]} {
    %c0 = arith.constant 0 : index
    %c0_0 = arith.constant 0 : index
    %0 = vector.load %arg1[%c0, %c0_0] : memref<256x32xf32, #tpu.memory_space<vmem>>, vector<256x32xf32>
    %c0_1 = arith.constant 0 : index
    %c0_2 = arith.constant 0 : index
    %1 = vector.load %arg3[%c0_1, %c0_2] : memref<32x128xf32, #tpu.memory_space<vmem>>, vector<32x128xf32>
    %cst = arith.constant dense<0.000000e+00> : vector<256x128xf32>
    %2 = tpu.matmul %0, %1, %cst {dimension_numbers = #tpu.dot_dimension_numbers<[1], [0], [0], [1], [0, 0, 1, 1], [], []>} : vector<256x32xf32>, vector<32x128xf32>, vector<256x128xf32> -> vector<256x128xf32>
    %c0_3 = arith.constant 0 : index
    %c0_4 = arith.constant 0 : index
    %3 = vector.load %arg4[%c0_3, %c0_4] : memref<1x128xf32, #tpu.memory_space<vmem>>, vector<1x128xf32>
    %4 = vector.broadcast %3 : vector<1x128xf32> to vector<256x128xf32>
    %5 = arith.addf %2, %4 : vector<256x128xf32>
    %cst_5 = arith.constant 0.000000e+00 : f32
    %6 = vector.broadcast %cst_5 : f32 to vector<256x128xf32>
    %7 = arith.maximumf %5, %6 : vector<256x128xf32>
    %c0_6 = arith.constant 0 : index
    %c0_7 = arith.constant 0 : index
    %8 = vector.load %arg2[%c0_6, %c0_7] : memref<256x3xf32, #tpu.memory_space<vmem>>, vector<256x3xf32>
    %9 = vector.extract_strided_slice %8 {offsets = [0, 0], sizes = [256, 1], strides = [1, 1]} : vector<256x3xf32> to vector<256x1xf32>
    %10 = vector.extract_strided_slice %8 {offsets = [0, 1], sizes = [256, 1], strides = [1, 1]} : vector<256x3xf32> to vector<256x1xf32>
    %11 = vector.extract_strided_slice %8 {offsets = [0, 2], sizes = [256, 1], strides = [1, 1]} : vector<256x3xf32> to vector<256x1xf32>
    %12 = arith.mulf %9, %9 : vector<256x1xf32>
    %13 = arith.mulf %10, %10 : vector<256x1xf32>
    %14 = arith.addf %12, %13 : vector<256x1xf32>
    %15 = arith.mulf %11, %11 : vector<256x1xf32>
    %16 = arith.addf %14, %15 : vector<256x1xf32>
    %cst_8 = arith.constant 1.000000e-24 : f32
    %17 = vector.broadcast %cst_8 : f32 to vector<256x1xf32>
    %18 = arith.maximumf %16, %17 : vector<256x1xf32>
    %19 = math.rsqrt %18 : vector<256x1xf32>
    %c0_9 = arith.constant 0 : index
    %c0_10 = arith.constant 0 : index
    %20 = vector.load %arg7[%c0_9, %c0_10] : memref<3x128xf32, #tpu.memory_space<vmem>>, vector<3x128xf32>
    %21 = arith.mulf %9, %19 : vector<256x1xf32>
    %22 = vector.extract_strided_slice %20 {offsets = [0, 0], sizes = [1, 128], strides = [1, 1]} : vector<3x128xf32> to vector<1x128xf32>
    %23 = vector.broadcast %21 : vector<256x1xf32> to vector<256x128xf32>
    %24 = vector.broadcast %22 : vector<1x128xf32> to vector<256x128xf32>
    %25 = arith.mulf %23, %24 : vector<256x128xf32>
    %26 = arith.mulf %10, %19 : vector<256x1xf32>
    %27 = vector.extract_strided_slice %20 {offsets = [1, 0], sizes = [1, 128], strides = [1, 1]} : vector<3x128xf32> to vector<1x128xf32>
    %28 = vector.broadcast %26 : vector<256x1xf32> to vector<256x128xf32>
    %29 = vector.broadcast %27 : vector<1x128xf32> to vector<256x128xf32>
    %30 = arith.mulf %28, %29 : vector<256x128xf32>
    %31 = arith.addf %25, %30 : vector<256x128xf32>
    %32 = arith.mulf %11, %19 : vector<256x1xf32>
    %33 = vector.extract_strided_slice %20 {offsets = [2, 0], sizes = [1, 128], strides = [1, 1]} : vector<3x128xf32> to vector<1x128xf32>
    %34 = vector.broadcast %32 : vector<256x1xf32> to vector<256x128xf32>
    %35 = vector.broadcast %33 : vector<1x128xf32> to vector<256x128xf32>
    %36 = arith.mulf %34, %35 : vector<256x128xf32>
    %37 = arith.addf %31, %36 : vector<256x128xf32>
    %c0_11 = arith.constant 0 : index
    %c0_12 = arith.constant 0 : index
    %38 = vector.load %arg5[%c0_11, %c0_12] : memref<128x128xf32, #tpu.memory_space<vmem>>, vector<128x128xf32>
    %cst_13 = arith.constant dense<0.000000e+00> : vector<256x128xf32>
    %39 = tpu.matmul %7, %38, %cst_13 {dimension_numbers = #tpu.dot_dimension_numbers<[1], [0], [0], [1], [0, 0, 1, 1], [], []>} : vector<256x128xf32>, vector<128x128xf32>, vector<256x128xf32> -> vector<256x128xf32>
    %40 = arith.addf %39, %37 : vector<256x128xf32>
    %c0_14 = arith.constant 0 : index
    %c0_15 = arith.constant 0 : index
    %41 = vector.load %arg6[%c0_14, %c0_15] : memref<1x128xf32, #tpu.memory_space<vmem>>, vector<1x128xf32>
    %42 = vector.broadcast %41 : vector<1x128xf32> to vector<256x128xf32>
    %43 = arith.addf %40, %42 : vector<256x128xf32>
    %cst_16 = arith.constant 0.000000e+00 : f32
    %44 = vector.broadcast %cst_16 : f32 to vector<256x128xf32>
    %45 = arith.maximumf %43, %44 : vector<256x128xf32>
    %c0_17 = arith.constant 0 : index
    %c0_18 = arith.constant 0 : index
    %46 = vector.load %arg8[%c0_17, %c0_18] : memref<128x128xf32, #tpu.memory_space<vmem>>, vector<128x128xf32>
    %cst_19 = arith.constant dense<0.000000e+00> : vector<256x128xf32>
    %47 = tpu.matmul %45, %46, %cst_19 {dimension_numbers = #tpu.dot_dimension_numbers<[1], [0], [0], [1], [0, 0, 1, 1], [], []>} : vector<256x128xf32>, vector<128x128xf32>, vector<256x128xf32> -> vector<256x128xf32>
    %c0_20 = arith.constant 0 : index
    %c0_21 = arith.constant 0 : index
    %48 = vector.load %arg9[%c0_20, %c0_21] : memref<1x128xf32, #tpu.memory_space<vmem>>, vector<1x128xf32>
    %49 = vector.broadcast %48 : vector<1x128xf32> to vector<256x128xf32>
    %50 = arith.addf %47, %49 : vector<256x128xf32>
    %cst_22 = arith.constant 0.000000e+00 : f32
    %51 = vector.broadcast %cst_22 : f32 to vector<256x128xf32>
    %52 = arith.maximumf %50, %51 : vector<256x128xf32>
    %53 = vector.extract_strided_slice %52 {offsets = [0, 64], sizes = [256, 1], strides = [1, 1]} : vector<256x128xf32> to vector<256x1xf32>
    %c0_23 = arith.constant 0 : index
    %c0_24 = arith.constant 0 : index
    %54 = vector.load %arg10[%c0_23, %c0_24] : memref<128x4xf32, #tpu.memory_space<vmem>>, vector<128x4xf32>
    %cst_25 = arith.constant dense<0.000000e+00> : vector<256x4xf32>
    %55 = tpu.matmul %52, %54, %cst_25 {dimension_numbers = #tpu.dot_dimension_numbers<[1], [0], [0], [1], [0, 0, 1, 1], [], []>} : vector<256x128xf32>, vector<128x4xf32>, vector<256x4xf32> -> vector<256x4xf32>
    %c0_26 = arith.constant 0 : index
    %c0_27 = arith.constant 0 : index
    %56 = vector.load %arg11[%c0_26, %c0_27] : memref<1x4xf32, #tpu.memory_space<vmem>>, vector<1x4xf32>
    %57 = vector.broadcast %56 : vector<1x4xf32> to vector<256x4xf32>
    %58 = arith.addf %55, %57 : vector<256x4xf32>
    %59 = tpu.iota {dimensions = array<i32: 1>} : vector<256x4xi32>
    %c3_i32 = arith.constant 3 : i32
    %60 = vector.broadcast %c3_i32 : i32 to vector<256x4xi32>
    %61 = arith.cmpi slt, %59, %60 : vector<256x4xi32>
    %62 = arith.negf %58 : vector<256x4xf32>
    %63 = math.exp %62 : vector<256x4xf32>
    %cst_28 = arith.constant 1.000000e+00 : f32
    %64 = vector.broadcast %cst_28 : f32 to vector<256x4xf32>
    %65 = arith.addf %64, %63 : vector<256x4xf32>
    %66 = arith.divf %64, %65 : vector<256x4xf32>
    %67 = vector.shape_cast %53 : vector<256x1xf32> to vector<256x1xf32>
    %68 = vector.broadcast %67 : vector<256x1xf32> to vector<256x4xf32>
    %69 = arith.select %61, %66, %68 : vector<256x4xi1>, vector<256x4xf32>
    %c0_29 = arith.constant 0 : index
    %c0_30 = arith.constant 0 : index
    %70 = vector.load %arg12[%c0_29, %c0_30] : memref<256x4xf32, #tpu.memory_space<vmem>>, vector<256x4xf32>
    tpu.vector_store %arg12[%c0_29, %c0_30], %69 {strides = array<i32>} : memref<256x4xf32, #tpu.memory_space<vmem>>, vector<256x4xf32>,
    return
  }
  func.func @transform_0(%arg0: i32) -> (i32, i32) {
    %c0_i32 = arith.constant 0 : i32
    %c0_i32_0 = arith.constant 0 : i32
    return %arg0, %c0_i32 : i32, i32
  }
  func.func @transform_1(%arg0: i32) -> (i32, i32) {
    %c0_i32 = arith.constant 0 : i32
    %c0_i32_0 = arith.constant 0 : i32
    return %arg0, %c0_i32 : i32, i32
  }
  func.func @transform_2(%arg0: i32) -> (i32, i32) {
    %c0_i32 = arith.constant 0 : i32
    %c0_i32_0 = arith.constant 0 : i32
    %c0_i32_1 = arith.constant 0 : i32
    return %c0_i32, %c0_i32_0 : i32, i32
  }
  func.func @transform_3(%arg0: i32) -> (i32, i32) {
    %c0_i32 = arith.constant 0 : i32
    %c0_i32_0 = arith.constant 0 : i32
    %c0_i32_1 = arith.constant 0 : i32
    return %c0_i32, %c0_i32_0 : i32, i32
  }
  func.func @transform_4(%arg0: i32) -> (i32, i32) {
    %c0_i32 = arith.constant 0 : i32
    %c0_i32_0 = arith.constant 0 : i32
    %c0_i32_1 = arith.constant 0 : i32
    return %c0_i32, %c0_i32_0 : i32, i32
  }
  func.func @transform_5(%arg0: i32) -> (i32, i32) {
    %c0_i32 = arith.constant 0 : i32
    %c0_i32_0 = arith.constant 0 : i32
    %c0_i32_1 = arith.constant 0 : i32
    return %c0_i32, %c0_i32_0 : i32, i32
  }
  func.func @transform_6(%arg0: i32) -> (i32, i32) {
    %c0_i32 = arith.constant 0 : i32
    %c0_i32_0 = arith.constant 0 : i32
    %c0_i32_1 = arith.constant 0 : i32
    return %c0_i32, %c0_i32_0 : i32, i32
  }
  func.func @transform_7(%arg0: i32) -> (i32, i32) {
    %c0_i32 = arith.constant 0 : i32
    %c0_i32_0 = arith.constant 0 : i32
    %c0_i32_1 = arith.constant 0 : i32
    return %c0_i32, %c0_i32_0 : i32, i32
  }
  func.func @transform_8(%arg0: i32) -> (i32, i32) {
    %c0_i32 = arith.constant 0 : i32
    %c0_i32_0 = arith.constant 0 : i32
    %c0_i32_1 = arith.constant 0 : i32
    return %c0_i32, %c0_i32_0 : i32, i32
  }
  func.func @transform_9(%arg0: i32) -> (i32, i32) {
    %c0_i32 = arith.constant 0 : i32
    %c0_i32_0 = arith.constant 0 : i32
    %c0_i32_1 = arith.constant 0 : i32
    return %c0_i32, %c0_i32_0 : i32, i32
  }
  func.func @transform_10(%arg0: i32) -> (i32, i32) {
    %c0_i32 = arith.constant 0 : i32
    %c0_i32_0 = arith.constant 0 : i32
    %c0_i32_1 = arith.constant 0 : i32
    return %c0_i32, %c0_i32_0 : i32, i32
  }
  func.func @transform_11(%arg0: i32) -> (i32, i32) {
    %c0_i32 = arith.constant 0 : i32
    %c0_i32_0 = arith.constant 0 : i32
    return %arg0, %c0_i32 : i32, i32
  }
}

</mosaic_0001>

<llo_original>
// kernel: tpu_custom_call.1
$region0: #{tpu_custom_call.1}
  #allocation0 [shape = 'u32[]', space=smem, size = 0x4, offset = 0x4, fixed_abs, tag = 'smem constant byte address 0x4 - core index']
  #allocation1 [shape = 'u32[144,128]{1,0:T(1,128)}', space=vmem, size = 0x12000, scoped, tag = 'internal scratch']
  %s0 = inlined_call_operand.vmem [shape: f32[250,32], index: 0, kind: input, shape index: {}]
  %s1 = inlined_call_operand.vmem [shape: f32[250,3], index: 1, kind: input, shape index: {}]
  %s2 = inlined_call_operand.vmem [shape: f32[32,128], index: 2, kind: input, shape index: {}]
  %s3 = inlined_call_operand.vmem [shape: f32[1,128], index: 3, kind: input, shape index: {}]
  %s4 = inlined_call_operand.vmem [shape: f32[128,128], index: 4, kind: input, shape index: {}]
  %s5 = inlined_call_operand.vmem [shape: f32[1,128], index: 5, kind: input, shape index: {}]
  %s6 = inlined_call_operand.vmem [shape: f32[3,128], index: 6, kind: input, shape index: {}]
  %s7 = inlined_call_operand.vmem [shape: f32[128,128], index: 7, kind: input, shape index: {}]
  %s8 = inlined_call_operand.vmem [shape: f32[1,128], index: 8, kind: input, shape index: {}]
  %s9 = inlined_call_operand.vmem [shape: f32[128,4], index: 9, kind: input, shape index: {}]
  %s10 = inlined_call_operand.vmem [shape: f32[1,4], index: 10, kind: input, shape index: {}]
  %s11 = inlined_call_operand.vmem [shape: f32[250,4], index: 11, kind: output, shape index: {}]
  %s12 = sld [smem:[#allocation0]]
  $region54: #{tpu_custom_call.1} parent=0
    _
  %s14 = ssub.s32 1, %s12
  %s15 = scalar_select 0, %s14, %s12
  // Predicated region
  $region2: #{tpu_custom_call.1} parent=0 // pred_check
    _
  $region3: #{tpu_custom_call.1} parent=0 // pred_check_branch
    %17 = sbr.rel (0) target = $region5
  $region4: #{tpu_custom_call.1} parent=0 // pred_region
    _
  $region5: #{tpu_custom_call.1} parent=0 // pred_fallthru
    _
  // Predicated region
  $region6: #{tpu_custom_call.1} parent=0 // pred_check
    _
  $region7: #{tpu_custom_call.1} parent=0 // pred_check_branch
    %19 = sbr.rel (0) target = $region9
  $region8: #{tpu_custom_call.1} parent=0 // pred_region
    _
  $region9: #{tpu_custom_call.1} parent=0 // pred_fallthru
    _
  // Predicated region
  $region10: #{tpu_custom_call.1} parent=0 // pred_check
    _
  $region11: #{tpu_custom_call.1} parent=0 // pred_check_branch
    %21 = sbr.rel (0) target = $region13
  $region12: #{tpu_custom_call.1} parent=0 // pred_region
    _
  $region13: #{tpu_custom_call.1} parent=0 // pred_fallthru
    _
  // Predicated region
  $region14: #{tpu_custom_call.1} parent=0 // pred_check
    _
  $region15: #{tpu_custom_call.1} parent=0 // pred_check_branch
    %23 = sbr.rel (0) target = $region17
  $region16: #{tpu_custom_call.1} parent=0 // pred_region
    _
  $region17: #{tpu_custom_call.1} parent=0 // pred_fallthru
    _
  // Predicated region
  $region18: #{tpu_custom_call.1} parent=0 // pred_check
    _
  $region19: #{tpu_custom_call.1} parent=0 // pred_check_branch
    %25 = sbr.rel (0) target = $region21
  $region20: #{tpu_custom_call.1} parent=0 // pred_region
    _
  $region21: #{tpu_custom_call.1} parent=0 // pred_fallthru
    _
  // Predicated region
  $region22: #{tpu_custom_call.1} parent=0 // pred_check
    _
  $region23: #{tpu_custom_call.1} parent=0 // pred_check_branch
    %27 = sbr.rel (0) target = $region25
  $region24: #{tpu_custom_call.1} parent=0 // pred_region
    _
  $region25: #{tpu_custom_call.1} parent=0 // pred_fallthru
    _
  // Predicated region
  $region26: #{tpu_custom_call.1} parent=0 // pred_check
    _
  $region27: #{tpu_custom_call.1} parent=0 // pred_check_branch
    %29 = sbr.rel (0) target = $region29
  $region28: #{tpu_custom_call.1} parent=0 // pred_region
    _
  $region29: #{tpu_custom_call.1} parent=0 // pred_fallthru
    _
  // Predicated region
  $region30: #{tpu_custom_call.1} parent=0 // pred_check
    _
  $region31: #{tpu_custom_call.1} parent=0 // pred_check_branch
    %31 = sbr.rel (0) target = $region33
  $region32: #{tpu_custom_call.1} parent=0 // pred_region
    _
  $region33: #{tpu_custom_call.1} parent=0 // pred_fallthru
    _
  // Predicated region
  $region34: #{tpu_custom_call.1} parent=0 // pred_check
    _
  $region35: #{tpu_custom_call.1} parent=0 // pred_check_branch
    %33 = sbr.rel (0) target = $region37
  $region36: #{tpu_custom_call.1} parent=0 // pred_region
    _
  $region37: #{tpu_custom_call.1} parent=0 // pred_fallthru
    _
  // Predicated region
  $region38: #{tpu_custom_call.1} parent=0 // pred_check
    _
  $region39: #{tpu_custom_call.1} parent=0 // pred_check_branch
    %35 = sbr.rel (0) target = $region41
  $region40: #{tpu_custom_call.1} parent=0 // pred_region
    _
  $region41: #{tpu_custom_call.1} parent=0 // pred_fallthru
    _
  // Predicated region
  $region42: #{tpu_custom_call.1} parent=0 // pred_check
    _
  $region43: #{tpu_custom_call.1} parent=0 // pred_check_branch
    %37 = sbr.rel (0) target = $region45
  $region44: #{tpu_custom_call.1} parent=0 // pred_region
    _
  $region45: #{tpu_custom_call.1} parent=0 // pred_fallthru
    _
  %v38 = vld [vmem:[%s0] sm:$0xff]
  %v39 = vld [vmem:[%s0 + $0x8] sm:$0xff]
  %v40 = vld [vmem:[%s0 + $0x10] sm:$0xff]
  %v41 = vld [vmem:[%s0 + $0x18] sm:$0xff]
  %v42 = vld [vmem:[%s0 + $0x20] sm:$0xff]
  %v43 = vld [vmem:[%s0 + $0x28] sm:$0xff]
  %v44 = vld [vmem:[%s0 + $0x30] sm:$0xff]
  %v45 = vld [vmem:[%s0 + $0x38] sm:$0xff]
  %v46 = vld [vmem:[%s0 + $0x40] sm:$0xff]
  %v47 = vld [vmem:[%s0 + $0x48] sm:$0xff]
  %v48 = vld [vmem:[%s0 + $0x50] sm:$0xff]
  %v49 = vld [vmem:[%s0 + $0x58] sm:$0xff]
  %v50 = vld [vmem:[%s0 + $0x60] sm:$0xff]
  %v51 = vld [vmem:[%s0 + $0x68] sm:$0xff]
  %v52 = vld [vmem:[%s0 + $0x70] sm:$0xff]
  %v53 = vld [vmem:[%s0 + $0x78] sm:$0xff]
  %v54 = vld [vmem:[%s0 + $0x80] sm:$0xff]
  %v55 = vld [vmem:[%s0 + $0x88] sm:$0xff]
  %v56 = vld [vmem:[%s0 + $0x90] sm:$0xff]
  %v57 = vld [vmem:[%s0 + $0x98] sm:$0xff]
  %v58 = vld [vmem:[%s0 + $0xa0] sm:$0xff]
  %v59 = vld [vmem:[%s0 + $0xa8] sm:$0xff]
  %v60 = vld [vmem:[%s0 + $0xb0] sm:$0xff]
  %v61 = vld [vmem:[%s0 + $0xb8] sm:$0xff]
  %v62 = vld [vmem:[%s0 + $0xc0] sm:$0xff]
  %v63 = vld [vmem:[%s0 + $0xc8] sm:$0xff]
  %v64 = vld [vmem:[%s0 + $0xd0] sm:$0xff]
  %v65 = vld [vmem:[%s0 + $0xd8] sm:$0xff]
  %v66 = vld [vmem:[%s0 + $0xe0] sm:$0xff]
  %v67 = vld [vmem:[%s0 + $0xe8] sm:$0xff]
  %v68 = vld [vmem:[%s0 + $0xf0] sm:$0xff]
  %v69 = vld [vmem:[%s0 + $0xf8] sm:$0xff]
  %v70 = vld [vmem:[%s2] sm:$0xff]
  %v71 = vld [vmem:[%s2 + $0x8] sm:$0xff]
  %v72 = vld [vmem:[%s2 + $0x10] sm:$0xff]
  %v73 = vld [vmem:[%s2 + $0x18] sm:$0xff]
  %v74 = vld [vmem:[%s3] sm:$0x1]
  %v76 = vlaneseq
  %v77 = vshrl.u32 %v76, 7
  %v78 = vsub.s32 0, %v77
  %v79 = vrot.slane %v74, %v78
  %vm81 = vcmask 261120
  %v83 = vsel %vm81, %v38, 0
  %v86 = vsel %vm81, %v39, 0
  %v89 = vsel %vm81, %v40, 0
  %v92 = vsel %vm81, %v41, 0
  %v95 = vsel %vm81, %v42, 0
  %v98 = vsel %vm81, %v43, 0
  %v101 = vsel %vm81, %v44, 0
  %v104 = vsel %vm81, %v45, 0
  %v107 = vsel %vm81, %v46, 0
  %v110 = vsel %vm81, %v47, 0
  %v113 = vsel %vm81, %v48, 0
  %v116 = vsel %vm81, %v49, 0
  %v119 = vsel %vm81, %v50, 0
  %v122 = vsel %vm81, %v51, 0
  %v125 = vsel %vm81, %v52, 0
  %v128 = vsel %vm81, %v53, 0
  %v131 = vsel %vm81, %v54, 0
  %v134 = vsel %vm81, %v55, 0
  %v137 = vsel %vm81, %v56, 0
  %v140 = vsel %vm81, %v57, 0
  %v143 = vsel %vm81, %v58, 0
  %v146 = vsel %vm81, %v59, 0
  %v149 = vsel %vm81, %v60, 0
  %v152 = vsel %vm81, %v61, 0
  %v155 = vsel %vm81, %v62, 0
  %v158 = vsel %vm81, %v63, 0
  %v161 = vsel %vm81, %v64, 0
  %v164 = vsel %vm81, %v65, 0
  %v167 = vsel %vm81, %v66, 0
  %v170 = vsel %vm81, %v67, 0
  %v173 = vsel %vm81, %v68, 0
  %v176 = vsel %vm81, %v69, 0
  %178 = vmatprep.subr.mxu0 0.0
  %179 = vmatpush1.msra.mxu0 %v70
  %180 = vmatprep.subr.mxu0 0.0
  %181 = vmatpush1.msra.mxu0 %v71
  %182 = vmatprep.subr.mxu0 0.0
  %183 = vmatpush1.msra.mxu0 %v72
  %184 = vmatprep.subr.mxu0 0.0
  %185 = vmatpush1.msra.mxu0 %v73
  %186 = vmatprep.subr.mxu0 0.0
  %187 = vmatpush1.msra.mxu0 0.0
  %188 = vmatprep.subr.mxu0 0.0
  %189 = vmatpush1.msra.mxu0 0.0
  %190 = vmatprep.subr.mxu0 0.0
  %191 = vmatpush1.msra.mxu0 0.0
  %192 = vmatprep.subr.mxu0 0.0
  %193 = vmatpush1.msra.mxu0 0.0
  %194 = vmatprep.subr.mxu0 0.0
  %195 = vmatpush1.msra.mxu0 0.0
  %196 = vmatprep.subr.mxu0 0.0
  %197 = vmatpush1.msra.mxu0 0.0
  %198 = vmatprep.subr.mxu0 0.0
  %199 = vmatpush1.msra.mxu0 0.0
  %200 = vmatprep.subr.mxu0 0.0
  %201 = vmatpush1.msra.mxu0 0.0
  %202 = vmatprep.subr.mxu0 0.0
  %203 = vmatpush1.msra.mxu0 0.0
  %204 = vmatprep.subr.mxu0 0.0
  %205 = vmatpush1.msra.mxu0 0.0
  %206 = vmatprep.subr.mxu0 0.0
  %207 = vmatpush1.msra.mxu0 0.0
  %208 = vmatprep.subr.mxu0 0.0
  %209 = vmatpush1.msra.mxu0 0.0
  %210 = vmatprep.subr.mxu0 0.0
  %211 = vmatpush1.msra.mxu0 0.0
  %212 = vmatprep.subr.mxu0 0.0
  %213 = vmatpush1.msra.mxu0 0.0
  %214 = vmatprep.subr.mxu0 0.0
  %215 = vmatpush1.msra.mxu0 0.0
  %216 = vmatprep.subr.mxu0 0.0
  %217 = vmatpush1.msra.mxu0 0.0
  %218 = vmatprep.subr.mxu0 0.0
  %219 = vmatpush1.msra.mxu0 0.0
  %220 = vmatprep.subr.mxu0 0.0
  %221 = vmatpush1.msra.mxu0 0.0
  %222 = vmatprep.subr.mxu0 0.0
  %223 = vmatpush1.msra.mxu0 0.0
  %224 = vmatprep.subr.mxu0 0.0
  %225 = vmatpush1.msra.mxu0 0.0
  %226 = vmatprep.subr.mxu0 0.0
  %227 = vmatpush1.msra.mxu0 0.0
  %228 = vmatprep.subr.mxu0 0.0
  %229 = vmatpush1.msra.mxu0 0.0
  %230 = vmatprep.subr.mxu0 0.0
  %231 = vmatpush1.msra.mxu0 0.0
  %232 = vmatprep.subr.mxu0 0.0
  %233 = vmatpush1.msra.mxu0 0.0
  %234 = vmatprep.subr.mxu0 0.0
  %235 = vmatpush1.msra.mxu0 0.0
  %236 = vmatprep.subr.mxu0 0.0
  %237 = vmatpush1.msra.mxu0 0.0
  %238 = vmatprep.subr.mxu0 0.0
  %239 = vmatpush1.msra.mxu0 0.0
  %240 = vmatprep.subr.mxu0 0.0
  %241 = vmatpush1.msra.mxu0 0.0
  %242 = vmatprep.mubr.f32.mxu0 0.0
  %243 = vmatmul.mubr.f32.gmra.mrb[0].mxu0 %v83
  %v244 = vpop.f32.mrb[0].mxu0
  %v245 = vadd.f32 %v79, %v244
  %v246 = vpop.f32.mrb[0].mxu0
  %247 = vmatprep.mubr.f32.mxu0 0.0
  %248 = vmatmul.mubr.f32.gmra.mrb[0].mxu0 %v86
  %v249 = vpop.f32.mrb[0].mxu0
  %v250 = vadd.f32 %v79, %v249
  %v251 = vpop.f32.mrb[0].mxu0
  %252 = vmatprep.mubr.f32.mxu0 0.0
  %253 = vmatmul.mubr.f32.gmra.mrb[0].mxu0 %v89
  %v254 = vpop.f32.mrb[0].mxu0
  %v255 = vadd.f32 %v79, %v254
  %v256 = vpop.f32.mrb[0].mxu0
  %257 = vmatprep.mubr.f32.mxu0 0.0
  %258 = vmatmul.mubr.f32.gmra.mrb[0].mxu0 %v92
  %v259 = vpop.f32.mrb[0].mxu0
  %v260 = vadd.f32 %v79, %v259
  %v261 = vpop.f32.mrb[0].mxu0
  %262 = vmatprep.mubr.f32.mxu0 0.0
  %263 = vmatmul.mubr.f32.gmra.mrb[0].mxu0 %v95
  %v264 = vpop.f32.mrb[0].mxu0
  %v265 = vadd.f32 %v79, %v264
  %v266 = vpop.f32.mrb[0].mxu0
  %267 = vmatprep.mubr.f32.mxu0 0.0
  %268 = vmatmul.mubr.f32.gmra.mrb[0].mxu0 %v98
  %v269 = vpop.f32.mrb[0].mxu0
  %v270 = vadd.f32 %v79, %v269
  %v271 = vpop.f32.mrb[0].mxu0
  %272 = vmatprep.mubr.f32.mxu0 0.0
  %273 = vmatmul.mubr.f32.gmra.mrb[0].mxu0 %v101
  %v274 = vpop.f32.mrb[0].mxu0
  %v275 = vadd.f32 %v79, %v274
  %v276 = vpop.f32.mrb[0].mxu0
  %277 = vmatprep.mubr.f32.mxu0 0.0
  %278 = vmatmul.mubr.f32.gmra.mrb[0].mxu0 %v104
  %v279 = vpop.f32.mrb[0].mxu0
  %v280 = vadd.f32 %v79, %v279
  %v281 = vpop.f32.mrb[0].mxu0
  %282 = vmatprep.mubr.f32.mxu0 0.0
  %283 = vmatmul.mubr.f32.gmra.mrb[0].mxu0 %v107
  %v284 = vpop.f32.mrb[0].mxu0
  %v285 = vadd.f32 %v79, %v284
  %v286 = vpop.f32.mrb[0].mxu0
  %287 = vmatprep.mubr.f32.mxu0 0.0
  %288 = vmatmul.mubr.f32.gmra.mrb[0].mxu0 %v110
  %v289 = vpop.f32.mrb[0].mxu0
  %v290 = vadd.f32 %v79, %v289
  %v291 = vpop.f32.mrb[0].mxu0
  %292 = vmatprep.mubr.f32.mxu0 0.0
  %293 = vmatmul.mubr.f32.gmra.mrb[0].mxu0 %v113
  %v294 = vpop.f32.mrb[0].mxu0
  %v295 = vadd.f32 %v79, %v294
  %v296 = vpop.f32.mrb[0].mxu0
  %297 = vmatprep.mubr.f32.mxu0 0.0
  %298 = vmatmul.mubr.f32.gmra.mrb[0].mxu0 %v116
  %v299 = vpop.f32.mrb[0].mxu0
  %v300 = vadd.f32 %v79, %v299
  %v301 = vpop.f32.mrb[0].mxu0
  %302 = vmatprep.mubr.f32.mxu0 0.0
  %303 = vmatmul.mubr.f32.gmra.mrb[0].mxu0 %v119
  %v304 = vpop.f32.mrb[0].mxu0
  %v305 = vadd.f32 %v79, %v304
  %v306 = vpop.f32.mrb[0].mxu0
  %307 = vmatprep.mubr.f32.mxu0 0.0
  %308 = vmatmul.mubr.f32.gmra.mrb[0].mxu0 %v122
  %v309 = vpop.f32.mrb[0].mxu0
  %v310 = vadd.f32 %v79, %v309
  %v311 = vpop.f32.mrb[0].mxu0
  %312 = vmatprep.mubr.f32.mxu0 0.0
  %313 = vmatmul.mubr.f32.gmra.mrb[0].mxu0 %v125
  %v314 = vpop.f32.mrb[0].mxu0
  %v315 = vadd.f32 %v79, %v314
  %v316 = vpop.f32.mrb[0].mxu0
  %317 = vmatprep.mubr.f32.mxu0 0.0
  %318 = vmatmul.mubr.f32.gmra.mrb[0].mxu0 %v128
  %v319 = vpop.f32.mrb[0].mxu0
  %v320 = vadd.f32 %v79, %v319
  %v321 = vpop.f32.mrb[0].mxu0
  %322 = vmatprep.mubr.f32.mxu0 0.0
  %323 = vmatmul.mubr.f32.gmra.mrb[0].mxu0 %v131
  %v324 = vpop.f32.mrb[0].mxu0
  %v325 = vadd.f32 %v79, %v324
  %v326 = vpop.f32.mrb[0].mxu0
  %327 = vmatprep.mubr.f32.mxu0 0.0
  %328 = vmatmul.mubr.f32.gmra.mrb[0].mxu0 %v134
  %v329 = vpop.f32.mrb[0].mxu0
  %v330 = vadd.f32 %v79, %v329
  %v331 = vpop.f32.mrb[0].mxu0
  %332 = vmatprep.mubr.f32.mxu0 0.0
  %333 = vmatmul.mubr.f32.gmra.mrb[0].mxu0 %v137
  %v334 = vpop.f32.mrb[0].mxu0
  %v335 = vadd.f32 %v79, %v334
  %v336 = vpop.f32.mrb[0].mxu0
  %337 = vmatprep.mubr.f32.mxu0 0.0
  %338 = vmatmul.mubr.f32.gmra.mrb[0].mxu0 %v140
  %v339 = vpop.f32.mrb[0].mxu0
  %v340 = vadd.f32 %v79, %v339
  %v341 = vpop.f32.mrb[0].mxu0
  %342 = vmatprep.mubr.f32.mxu0 0.0
  %343 = vmatmul.mubr.f32.gmra.mrb[0].mxu0 %v143
  %v344 = vpop.f32.mrb[0].mxu0
  %v345 = vadd.f32 %v79, %v344
  %v346 = vpop.f32.mrb[0].mxu0
  %347 = vmatprep.mubr.f32.mxu0 0.0
  %348 = vmatmul.mubr.f32.gmra.mrb[0].mxu0 %v146
  %v349 = vpop.f32.mrb[0].mxu0
  %v350 = vadd.f32 %v79, %v349
  %v351 = vpop.f32.mrb[0].mxu0
  %352 = vmatprep.mubr.f32.mxu0 0.0
  %353 = vmatmul.mubr.f32.gmra.mrb[0].mxu0 %v149
  %v354 = vpop.f32.mrb[0].mxu0
  %v355 = vadd.f32 %v79, %v354
  %v356 = vpop.f32.mrb[0].mxu0
  %357 = vmatprep.mubr.f32.mxu0 0.0
  %358 = vmatmul.mubr.f32.gmra.mrb[0].mxu0 %v152
  %v359 = vpop.f32.mrb[0].mxu0
  %v360 = vadd.f32 %v79, %v359
  %v361 = vpop.f32.mrb[0].mxu0
  %362 = vmatprep.mubr.f32.mxu0 0.0
  %363 = vmatmul.mubr.f32.gmra.mrb[0].mxu0 %v155
  %v364 = vpop.f32.mrb[0].mxu0
  %v365 = vadd.f32 %v79, %v364
  %v366 = vpop.f32.mrb[0].mxu0
  %367 = vmatprep.mubr.f32.mxu0 0.0
  %368 = vmatmul.mubr.f32.gmra.mrb[0].mxu0 %v158
  %v369 = vpop.f32.mrb[0].mxu0
  %v370 = vadd.f32 %v79, %v369
  %v371 = vpop.f32.mrb[0].mxu0
  %372 = vmatprep.mubr.f32.mxu0 0.0
  %373 = vmatmul.mubr.f32.gmra.mrb[0].mxu0 %v161
  %v374 = vpop.f32.mrb[0].mxu0
  %v375 = vadd.f32 %v79, %v374
  %v376 = vpop.f32.mrb[0].mxu0
  %377 = vmatprep.mubr.f32.mxu0 0.0
  %378 = vmatmul.mubr.f32.gmra.mrb[0].mxu0 %v164
  %v379 = vpop.f32.mrb[0].mxu0
  %v380 = vadd.f32 %v79, %v379
  %v381 = vpop.f32.mrb[0].mxu0
  %382 = vmatprep.mubr.f32.mxu0 0.0
  %383 = vmatmul.mubr.f32.gmra.mrb[0].mxu0 %v167
  %v384 = vpop.f32.mrb[0].mxu0
  %v385 = vadd.f32 %v79, %v384
  %v386 = vpop.f32.mrb[0].mxu0
  %387 = vmatprep.mubr.f32.mxu0 0.0
  %388 = vmatmul.mubr.f32.gmra.mrb[0].mxu0 %v170
  %v389 = vpop.f32.mrb[0].mxu0
  %v390 = vadd.f32 %v79, %v389
  %v391 = vpop.f32.mrb[0].mxu0
  %392 = vmatprep.mubr.f32.mxu0 0.0
  %393 = vmatmul.mubr.f32.gmra.mrb[0].mxu0 %v173
  %v394 = vpop.f32.mrb[0].mxu0
  %v395 = vadd.f32 %v79, %v394
  %v396 = vpop.f32.mrb[0].mxu0
  %397 = vmatprep.mubr.f32.mxu0 0.0
  %398 = vmatmul.mubr.f32.gmra.mrb[0].mxu0 %v176
  %v399 = vpop.f32.mrb[0].mxu0
  %v400 = vadd.f32 %v79, %v399
  %v401 = vpop.f32.mrb[0].mxu0
  %402 = vdwg.mxu0
  %v403 = vmax.f32 %v245, 0.0
  %v404 = vmax.f32 %v250, 0.0
  %v405 = vmax.f32 %v255, 0.0
  %v406 = vmax.f32 %v260, 0.0
  %v407 = vmax.f32 %v265, 0.0
  %v408 = vmax.f32 %v270, 0.0
  %v409 = vmax.f32 %v275, 0.0
  %v410 = vmax.f32 %v280, 0.0
  %v411 = vmax.f32 %v285, 0.0
  %v412 = vmax.f32 %v290, 0.0
  %v413 = vmax.f32 %v295, 0.0
  %v414 = vmax.f32 %v300, 0.0
  %v415 = vmax.f32 %v305, 0.0
  %v416 = vmax.f32 %v310, 0.0
  %v417 = vmax.f32 %v315, 0.0
  %v418 = vmax.f32 %v320, 0.0
  %v419 = vmax.f32 %v325, 0.0
  %v420 = vmax.f32 %v330, 0.0
  %v421 = vmax.f32 %v335, 0.0
  %v422 = vmax.f32 %v340, 0.0
  %v423 = vmax.f32 %v345, 0.0
  %v424 = vmax.f32 %v350, 0.0
  %v425 = vmax.f32 %v355, 0.0
  %v426 = vmax.f32 %v360, 0.0
  %v427 = vmax.f32 %v365, 0.0
  %v428 = vmax.f32 %v370, 0.0
  %v429 = vmax.f32 %v375, 0.0
  %v430 = vmax.f32 %v380, 0.0
  %v431 = vmax.f32 %v385, 0.0
  %v432 = vmax.f32 %v390, 0.0
  %v433 = vmax.f32 %v395, 0.0
  %v434 = vmax.f32 %v400, 0.0
  %v435 = vld [vmem:[%s1] sm:$0xff]
  %v436 = vld [vmem:[%s1 + $0x8] sm:$0xff]
  %v437 = vld [vmem:[%s1 + $0x10] sm:$0xff]
  %v438 = vld [vmem:[%s1 + $0x18] sm:$0xff]
  %v439 = vld [vmem:[%s1 + $0x20] sm:$0xff]
  %v440 = vld [vmem:[%s1 + $0x28] sm:$0xff]
  %v441 = vld [vmem:[%s1 + $0x30] sm:$0xff]
  %v442 = vld [vmem:[%s1 + $0x38] sm:$0xff]
  %v443 = vld [vmem:[%s1 + $0x40] sm:$0xff]
  %v444 = vld [vmem:[%s1 + $0x48] sm:$0xff]
  %v445 = vld [vmem:[%s1 + $0x50] sm:$0xff]
  %v446 = vld [vmem:[%s1 + $0x58] sm:$0xff]
  %v447 = vld [vmem:[%s1 + $0x60] sm:$0xff]
  %v448 = vld [vmem:[%s1 + $0x68] sm:$0xff]
  %v449 = vld [vmem:[%s1 + $0x70] sm:$0xff]
  %v450 = vld [vmem:[%s1 + $0x78] sm:$0xff]
  %v451 = vld [vmem:[%s1 + $0x80] sm:$0xff]
  %v452 = vld [vmem:[%s1 + $0x88] sm:$0xff]
  %v453 = vld [vmem:[%s1 + $0x90] sm:$0xff]
  %v454 = vld [vmem:[%s1 + $0x98] sm:$0xff]
  %v455 = vld [vmem:[%s1 + $0xa0] sm:$0xff]
  %v456 = vld [vmem:[%s1 + $0xa8] sm:$0xff]
  %v457 = vld [vmem:[%s1 + $0xb0] sm:$0xff]
  %v458 = vld [vmem:[%s1 + $0xb8] sm:$0xff]
  %v459 = vld [vmem:[%s1 + $0xc0] sm:$0xff]
  %v460 = vld [vmem:[%s1 + $0xc8] sm:$0xff]
  %v461 = vld [vmem:[%s1 + $0xd0] sm:$0xff]
  %v462 = vld [vmem:[%s1 + $0xd8] sm:$0xff]
  %v463 = vld [vmem:[%s1 + $0xe0] sm:$0xff]
  %v464 = vld [vmem:[%s1 + $0xe8] sm:$0xff]
  %v465 = vld [vmem:[%s1 + $0xf0] sm:$0xff]
  %v466 = vld [vmem:[%s1 + $0xf8] sm:$0xff]
  %v467 = vmul.f32 %v435, %v435
  %v468 = vmul.f32 %v436, %v436
  %v469 = vmul.f32 %v437, %v437
  %v470 = vmul.f32 %v438, %v438
  %v471 = vmul.f32 %v439, %v439
  %v472 = vmul.f32 %v440, %v440
  %v473 = vmul.f32 %v441, %v441
  %v474 = vmul.f32 %v442, %v442
  %v475 = vmul.f32 %v443, %v443
  %v476 = vmul.f32 %v444, %v444
  %v477 = vmul.f32 %v445, %v445
  %v478 = vmul.f32 %v446, %v446
  %v479 = vmul.f32 %v447, %v447
  %v480 = vmul.f32 %v448, %v448
  %v481 = vmul.f32 %v449, %v449
  %v482 = vmul.f32 %v450, %v450
  %v483 = vmul.f32 %v451, %v451
  %v484 = vmul.f32 %v452, %v452
  %v485 = vmul.f32 %v453, %v453
  %v486 = vmul.f32 %v454, %v454
  %v487 = vmul.f32 %v455, %v455
  %v488 = vmul.f32 %v456, %v456
  %v489 = vmul.f32 %v457, %v457
  %v490 = vmul.f32 %v458, %v458
  %v491 = vmul.f32 %v459, %v459
  %v492 = vmul.f32 %v460, %v460
  %v493 = vmul.f32 %v461, %v461
  %v494 = vmul.f32 %v462, %v462
  %v495 = vmul.f32 %v463, %v463
  %v496 = vmul.f32 %v464, %v464
  %v497 = vmul.f32 %v465, %v465
  %v498 = vmul.f32 %v466, %v466
  %531 = vrot.lane.b32.xlu0 %v467, 127
  %v532 = vpop.permute.xlu0 %531
  %533 = vrot.lane.b32.xlu0 %v468, 127
  %v534 = vpop.permute.xlu0 %533
  %535 = vrot.lane.b32.xlu0 %v469, 127
  %v536 = vpop.permute.xlu0 %535
  %537 = vrot.lane.b32.xlu0 %v470, 127
  %v538 = vpop.permute.xlu0 %537
  %539 = vrot.lane.b32.xlu0 %v471, 127
  %v540 = vpop.permute.xlu0 %539
  %541 = vrot.lane.b32.xlu0 %v472, 127
  %v542 = vpop.permute.xlu0 %541
  %543 = vrot.lane.b32.xlu0 %v473, 127
  %v544 = vpop.permute.xlu0 %543
  %545 = vrot.lane.b32.xlu0 %v474, 127
  %v546 = vpop.permute.xlu0 %545
  %547 = vrot.lane.b32.xlu0 %v475, 127
  %v548 = vpop.permute.xlu0 %547
  %549 = vrot.lane.b32.xlu0 %v476, 127
  %v550 = vpop.permute.xlu0 %549
  %551 = vrot.lane.b32.xlu0 %v477, 127
  %v552 = vpop.permute.xlu0 %551
  %553 = vrot.lane.b32.xlu0 %v478, 127
  %v554 = vpop.permute.xlu0 %553
  %555 = vrot.lane.b32.xlu0 %v479, 127
  %v556 = vpop.permute.xlu0 %555
  %557 = vrot.lane.b32.xlu0 %v480, 127
  %v558 = vpop.permute.xlu0 %557
  %559 = vrot.lane.b32.xlu0 %v481, 127
  %v560 = vpop.permute.xlu0 %559
  %561 = vrot.lane.b32.xlu0 %v482, 127
  %v562 = vpop.permute.xlu0 %561
  %563 = vrot.lane.b32.xlu0 %v483, 127
  %v564 = vpop.permute.xlu0 %563
  %565 = vrot.lane.b32.xlu0 %v484, 127
  %v566 = vpop.permute.xlu0 %565
  %567 = vrot.lane.b32.xlu0 %v485, 127
  %v568 = vpop.permute.xlu0 %567
  %569 = vrot.lane.b32.xlu0 %v486, 127
  %v570 = vpop.permute.xlu0 %569
  %571 = vrot.lane.b32.xlu0 %v487, 127
  %v572 = vpop.permute.xlu0 %571
  %573 = vrot.lane.b32.xlu0 %v488, 127
  %v574 = vpop.permute.xlu0 %573
  %575 = vrot.lane.b32.xlu0 %v489, 127
  %v576 = vpop.permute.xlu0 %575
  %577 = vrot.lane.b32.xlu0 %v490, 127
  %v578 = vpop.permute.xlu0 %577
  %579 = vrot.lane.b32.xlu0 %v491, 127
  %v580 = vpop.permute.xlu0 %579
  %581 = vrot.lane.b32.xlu0 %v492, 127
  %v582 = vpop.permute.xlu0 %581
  %583 = vrot.lane.b32.xlu0 %v493, 127
  %v584 = vpop.permute.xlu0 %583
  %585 = vrot.lane.b32.xlu0 %v494, 127
  %v586 = vpop.permute.xlu0 %585
  %587 = vrot.lane.b32.xlu0 %v495, 127
  %v588 = vpop.permute.xlu0 %587
  %589 = vrot.lane.b32.xlu0 %v496, 127
  %v590 = vpop.permute.xlu0 %589
  %591 = vrot.lane.b32.xlu0 %v497, 127
  %v592 = vpop.permute.xlu0 %591
  %593 = vrot.lane.b32.xlu0 %v498, 127
  %v594 = vpop.permute.xlu0 %593
  %v627 = vadd.f32 %v467, %v532
  %v628 = vadd.f32 %v468, %v534
  %v629 = vadd.f32 %v469, %v536
  %v630 = vadd.f32 %v470, %v538
  %v631 = vadd.f32 %v471, %v540
  %v632 = vadd.f32 %v472, %v542
  %v633 = vadd.f32 %v473, %v544
  %v634 = vadd.f32 %v474, %v546
  %v635 = vadd.f32 %v475, %v548
  %v636 = vadd.f32 %v476, %v550
  %v637 = vadd.f32 %v477, %v552
  %v638 = vadd.f32 %v478, %v554
  %v639 = vadd.f32 %v479, %v556
  %v640 = vadd.f32 %v480, %v558
  %v641 = vadd.f32 %v481, %v560
  %v642 = vadd.f32 %v482, %v562
  %v643 = vadd.f32 %v483, %v564
  %v644 = vadd.f32 %v484, %v566
  %v645 = vadd.f32 %v485, %v568
  %v646 = vadd.f32 %v486, %v570
  %v647 = vadd.f32 %v487, %v572
  %v648 = vadd.f32 %v488, %v574
  %v649 = vadd.f32 %v489, %v576
  %v650 = vadd.f32 %v490, %v578
  %v651 = vadd.f32 %v491, %v580
  %v652 = vadd.f32 %v492, %v582
  %v653 = vadd.f32 %v493, %v584
  %v654 = vadd.f32 %v494, %v586
  %v655 = vadd.f32 %v495, %v588
  %v656 = vadd.f32 %v496, %v590
  %v657 = vadd.f32 %v497, %v592
  %v658 = vadd.f32 %v498, %v594
  %659 = vrot.lane.b32.xlu0 %v467, 126
  %v660 = vpop.permute.xlu0 %659
  %661 = vrot.lane.b32.xlu0 %v468, 126
  %v662 = vpop.permute.xlu0 %661
  %663 = vrot.lane.b32.xlu0 %v469, 126
  %v664 = vpop.permute.xlu0 %663
  %665 = vrot.lane.b32.xlu0 %v470, 126
  %v666 = vpop.permute.xlu0 %665
  %667 = vrot.lane.b32.xlu0 %v471, 126
  %v668 = vpop.permute.xlu0 %667
  %669 = vrot.lane.b32.xlu0 %v472, 126
  %v670 = vpop.permute.xlu0 %669
  %671 = vrot.lane.b32.xlu0 %v473, 126
  %v672 = vpop.permute.xlu0 %671
  %673 = vrot.lane.b32.xlu0 %v474, 126
  %v674 = vpop.permute.xlu0 %673
  %675 = vrot.lane.b32.xlu0 %v475, 126
  %v676 = vpop.permute.xlu0 %675
  %677 = vrot.lane.b32.xlu0 %v476, 126
  %v678 = vpop.permute.xlu0 %677
  %679 = vrot.lane.b32.xlu0 %v477, 126
  %v680 = vpop.permute.xlu0 %679
  %681 = vrot.lane.b32.xlu0 %v478, 126
  %v682 = vpop.permute.xlu0 %681
  %683 = vrot.lane.b32.xlu0 %v479, 126
  %v684 = vpop.permute.xlu0 %683
  %685 = vrot.lane.b32.xlu0 %v480, 126
  %v686 = vpop.permute.xlu0 %685
  %687 = vrot.lane.b32.xlu0 %v481, 126
  %v688 = vpop.permute.xlu0 %687
  %689 = vrot.lane.b32.xlu0 %v482, 126
  %v690 = vpop.permute.xlu0 %689
  %691 = vrot.lane.b32.xlu0 %v483, 126
  %v692 = vpop.permute.xlu0 %691
  %693 = vrot.lane.b32.xlu0 %v484, 126
  %v694 = vpop.permute.xlu0 %693
  %695 = vrot.lane.b32.xlu0 %v485, 126
  %v696 = vpop.permute.xlu0 %695
  %697 = vrot.lane.b32.xlu0 %v486, 126
  %v698 = vpop.permute.xlu0 %697
  %699 = vrot.lane.b32.xlu0 %v487, 126
  %v700 = vpop.permute.xlu0 %699
  %701 = vrot.lane.b32.xlu0 %v488, 126
  %v702 = vpop.permute.xlu0 %701
  %703 = vrot.lane.b32.xlu0 %v489, 126
  %v704 = vpop.permute.xlu0 %703
  %705 = vrot.lane.b32.xlu0 %v490, 126
  %v706 = vpop.permute.xlu0 %705
  %707 = vrot.lane.b32.xlu0 %v491, 126
  %v708 = vpop.permute.xlu0 %707
  %709 = vrot.lane.b32.xlu0 %v492, 126
  %v710 = vpop.permute.xlu0 %709
  %711 = vrot.lane.b32.xlu0 %v493, 126
  %v712 = vpop.permute.xlu0 %711
  %713 = vrot.lane.b32.xlu0 %v494, 126
  %v714 = vpop.permute.xlu0 %713
  %715 = vrot.lane.b32.xlu0 %v495, 126
  %v716 = vpop.permute.xlu0 %715
  %717 = vrot.lane.b32.xlu0 %v496, 126
  %v718 = vpop.permute.xlu0 %717
  %719 = vrot.lane.b32.xlu0 %v497, 126
  %v720 = vpop.permute.xlu0 %719
  %721 = vrot.lane.b32.xlu0 %v498, 126
  %v722 = vpop.permute.xlu0 %721
  %v755 = vadd.f32 %v627, %v660
  %v756 = vadd.f32 %v628, %v662
  %v757 = vadd.f32 %v629, %v664
  %v758 = vadd.f32 %v630, %v666
  %v759 = vadd.f32 %v631, %v668
  %v760 = vadd.f32 %v632, %v670
  %v761 = vadd.f32 %v633, %v672
  %v762 = vadd.f32 %v634, %v674
  %v763 = vadd.f32 %v635, %v676
  %v764 = vadd.f32 %v636, %v678
  %v765 = vadd.f32 %v637, %v680
  %v766 = vadd.f32 %v638, %v682
  %v767 = vadd.f32 %v639, %v684
  %v768 = vadd.f32 %v640, %v686
  %v769 = vadd.f32 %v641, %v688
  %v770 = vadd.f32 %v642, %v690
  %v771 = vadd.f32 %v643, %v692
  %v772 = vadd.f32 %v644, %v694
  %v773 = vadd.f32 %v645, %v696
  %v774 = vadd.f32 %v646, %v698
  %v775 = vadd.f32 %v647, %v700
  %v776 = vadd.f32 %v648, %v702
  %v777 = vadd.f32 %v649, %v704
  %v778 = vadd.f32 %v650, %v706
  %v779 = vadd.f32 %v651, %v708
  %v780 = vadd.f32 %v652, %v710
  %v781 = vadd.f32 %v653, %v712
  %v782 = vadd.f32 %v654, %v714
  %v783 = vadd.f32 %v655, %v716
  %v784 = vadd.f32 %v656, %v718
  %v785 = vadd.f32 %v657, %v720
  %v786 = vadd.f32 %v658, %v722
  %v787 = vmax.f32 %v755, 1e-24
  %v788 = vmax.f32 %v756, 1e-24
  %v789 = vmax.f32 %v757, 1e-24
  %v790 = vmax.f32 %v758, 1e-24
  %v791 = vmax.f32 %v759, 1e-24
  %v792 = vmax.f32 %v760, 1e-24
  %v793 = vmax.f32 %v761, 1e-24
  %v794 = vmax.f32 %v762, 1e-24
  %v795 = vmax.f32 %v763, 1e-24
  %v796 = vmax.f32 %v764, 1e-24
  %v797 = vmax.f32 %v765, 1e-24
  %v798 = vmax.f32 %v766, 1e-24
  %v799 = vmax.f32 %v767, 1e-24
  %v800 = vmax.f32 %v768, 1e-24
  %v801 = vmax.f32 %v769, 1e-24
  %v802 = vmax.f32 %v770, 1e-24
  %v803 = vmax.f32 %v771, 1e-24
  %v804 = vmax.f32 %v772, 1e-24
  %v805 = vmax.f32 %v773, 1e-24
  %v806 = vmax.f32 %v774, 1e-24
  %v807 = vmax.f32 %v775, 1e-24
  %v808 = vmax.f32 %v776, 1e-24
  %v809 = vmax.f32 %v777, 1e-24
  %v810 = vmax.f32 %v778, 1e-24
  %v811 = vmax.f32 %v779, 1e-24
  %v812 = vmax.f32 %v780, 1e-24
  %v813 = vmax.f32 %v781, 1e-24
  %v814 = vmax.f32 %v782, 1e-24
  %v815 = vmax.f32 %v783, 1e-24
  %v816 = vmax.f32 %v784, 1e-24
  %v817 = vmax.f32 %v785, 1e-24
  %v818 = vmax.f32 %v786, 1e-24
  %v819 = vrsqrt.pop %v787
  %v820 = vrsqrt.pop %v788
  %v821 = vrsqrt.pop %v789
  %v822 = vrsqrt.pop %v790
  %v823 = vrsqrt.pop %v791
  %v824 = vrsqrt.pop %v792
  %v825 = vrsqrt.pop %v793
  %v826 = vrsqrt.pop %v794
  %v827 = vrsqrt.pop %v795
  %v828 = vrsqrt.pop %v796
  %v829 = vrsqrt.pop %v797
  %v830 = vrsqrt.pop %v798
  %v831 = vrsqrt.pop %v799
  %v832 = vrsqrt.pop %v800
  %v833 = vrsqrt.pop %v801
  %v834 = vrsqrt.pop %v802
  %v835 = vrsqrt.pop %v803
  %v836 = vrsqrt.pop %v804
  %v837 = vrsqrt.pop %v805
  %v838 = vrsqrt.pop %v806
  %v839 = vrsqrt.pop %v807
  %v840 = vrsqrt.pop %v808
  %v841 = vrsqrt.pop %v809
  %v842 = vrsqrt.pop %v810
  %v843 = vrsqrt.pop %v811
  %v844 = vrsqrt.pop %v812
  %v845 = vrsqrt.pop %v813
  %v846 = vrsqrt.pop %v814
  %v847 = vrsqrt.pop %v815
  %v848 = vrsqrt.pop %v816
  %v849 = vrsqrt.pop %v817
  %v850 = vrsqrt.pop %v818
  %v851 = vld [vmem:[%s6] sm:$0x7]
  %v852 = vmul.f32 %v435, %v819
  %v853 = vmul.f32 %v436, %v820
  %v854 = vmul.f32 %v437, %v821
  %v855 = vmul.f32 %v438, %v822
  %v856 = vmul.f32 %v439, %v823
  %v857 = vmul.f32 %v440, %v824
  %v858 = vmul.f32 %v441, %v825
  %v859 = vmul.f32 %v442, %v826
  %v860 = vmul.f32 %v443, %v827
  %v861 = vmul.f32 %v444, %v828
  %v862 = vmul.f32 %v445, %v829
  %v863 = vmul.f32 %v446, %v830
  %v864 = vmul.f32 %v447, %v831
  %v865 = vmul.f32 %v448, %v832
  %v866 = vmul.f32 %v449, %v833
  %v867 = vmul.f32 %v450, %v834
  %v868 = vmul.f32 %v451, %v835
  %v869 = vmul.f32 %v452, %v836
  %v870 = vmul.f32 %v453, %v837
  %v871 = vmul.f32 %v454, %v838
  %v872 = vmul.f32 %v455, %v839
  %v873 = vmul.f32 %v456, %v840
  %v874 = vmul.f32 %v457, %v841
  %v875 = vmul.f32 %v458, %v842
  %v876 = vmul.f32 %v459, %v843
  %v877 = vmul.f32 %v460, %v844
  %v878 = vmul.f32 %v461, %v845
  %v879 = vmul.f32 %v462, %v846
  %v880 = vmul.f32 %v463, %v847
  %v881 = vmul.f32 %v464, %v848
  %v882 = vmul.f32 %v465, %v849
  %v883 = vmul.f32 %v466, %v850
  %885 = vset.pattern.permute.xlu0 0
  %886 = vperm.xlu0 %885, %v852
  %v887 = vpop.permute.xlu0 %886
  %890 = vset.pattern.permute.xlu0 0
  %891 = vperm.xlu0 %890, %v853
  %v892 = vpop.permute.xlu0 %891
  %895 = vset.pattern.permute.xlu0 0
  %896 = vperm.xlu0 %895, %v854
  %v897 = vpop.permute.xlu0 %896
  %900 = vset.pattern.permute.xlu0 0
  %901 = vperm.xlu0 %900, %v855
  %v902 = vpop.permute.xlu0 %901
  %905 = vset.pattern.permute.xlu0 0
  %906 = vperm.xlu0 %905, %v856
  %v907 = vpop.permute.xlu0 %906
  %910 = vset.pattern.permute.xlu0 0
  %911 = vperm.xlu0 %910, %v857
  %v912 = vpop.permute.xlu0 %911
  %915 = vset.pattern.permute.xlu0 0
  %916 = vperm.xlu0 %915, %v858
  %v917 = vpop.permute.xlu0 %916
  %920 = vset.pattern.permute.xlu0 0
  %921 = vperm.xlu0 %920, %v859
  %v922 = vpop.permute.xlu0 %921
  %925 = vset.pattern.permute.xlu0 0
  %926 = vperm.xlu0 %925, %v860
  %v927 = vpop.permute.xlu0 %926
  %930 = vset.pattern.permute.xlu0 0
  %931 = vperm.xlu0 %930, %v861
  %v932 = vpop.permute.xlu0 %931
  %935 = vset.pattern.permute.xlu0 0
  %936 = vperm.xlu0 %935, %v862
  %v937 = vpop.permute.xlu0 %936
  %940 = vset.pattern.permute.xlu0 0
  %941 = vperm.xlu0 %940, %v863
  %v942 = vpop.permute.xlu0 %941
  %945 = vset.pattern.permute.xlu0 0
  %946 = vperm.xlu0 %945, %v864
  %v947 = vpop.permute.xlu0 %946
  %950 = vset.pattern.permute.xlu0 0
  %951 = vperm.xlu0 %950, %v865
  %v952 = vpop.permute.xlu0 %951
  %955 = vset.pattern.permute.xlu0 0
  %956 = vperm.xlu0 %955, %v866
  %v957 = vpop.permute.xlu0 %956
  %960 = vset.pattern.permute.xlu0 0
  %961 = vperm.xlu0 %960, %v867
  %v962 = vpop.permute.xlu0 %961
  %965 = vset.pattern.permute.xlu0 0
  %966 = vperm.xlu0 %965, %v868
  %v967 = vpop.permute.xlu0 %966
  %970 = vset.pattern.permute.xlu0 0
  %971 = vperm.xlu0 %970, %v869
  %v972 = vpop.permute.xlu0 %971
  %975 = vset.pattern.permute.xlu0 0
  %976 = vperm.xlu0 %975, %v870
  %v977 = vpop.permute.xlu0 %976
  %980 = vset.pattern.permute.xlu0 0
  %981 = vperm.xlu0 %980, %v871
  %v982 = vpop.permute.xlu0 %981
  %985 = vset.pattern.permute.xlu0 0
  %986 = vperm.xlu0 %985, %v872
  %v987 = vpop.permute.xlu0 %986
  %990 = vset.pattern.permute.xlu0 0
  %991 = vperm.xlu0 %990, %v873
  %v992 = vpop.permute.xlu0 %991
  %995 = vset.pattern.permute.xlu0 0
  %996 = vperm.xlu0 %995, %v874
  %v997 = vpop.permute.xlu0 %996
  %1000 = vset.pattern.permute.xlu0 0
  %1001 = vperm.xlu0 %1000, %v875
  %v1002 = vpop.permute.xlu0 %1001
  %1005 = vset.pattern.permute.xlu0 0
  %1006 = vperm.xlu0 %1005, %v876
  %v1007 = vpop.permute.xlu0 %1006
  %1010 = vset.pattern.permute.xlu0 0
  %1011 = vperm.xlu0 %1010, %v877
  %v1012 = vpop.permute.xlu0 %1011
  %1015 = vset.pattern.permute.xlu0 0
  %1016 = vperm.xlu0 %1015, %v878
  %v1017 = vpop.permute.xlu0 %1016
  %1020 = vset.pattern.permute.xlu0 0
  %1021 = vperm.xlu0 %1020, %v879
  %v1022 = vpop.permute.xlu0 %1021
  %1025 = vset.pattern.permute.xlu0 0
  %1026 = vperm.xlu0 %1025, %v880
  %v1027 = vpop.permute.xlu0 %1026
  %1030 = vset.pattern.permute.xlu0 0
  %1031 = vperm.xlu0 %1030, %v881
  %v1032 = vpop.permute.xlu0 %1031
  %1035 = vset.pattern.permute.xlu0 0
  %1036 = vperm.xlu0 %1035, %v882
  %v1037 = vpop.permute.xlu0 %1036
  %1040 = vset.pattern.permute.xlu0 0
  %1041 = vperm.xlu0 %1040, %v883
  %v1042 = vpop.permute.xlu0 %1041
  %v1044 = vlaneseq
  %v1045 = vshrl.u32 %v1044, 7
  %v1046 = vsub.s32 0, %v1045
  %v1047 = vrot.slane %v851, %v1046
  %v1048 = vmul.f32 %v887, %v1047
  %v1049 = vmul.f32 %v892, %v1047
  %v1050 = vmul.f32 %v897, %v1047
  %v1051 = vmul.f32 %v902, %v1047
  %v1052 = vmul.f32 %v907, %v1047
  %v1053 = vmul.f32 %v912, %v1047
  %v1054 = vmul.f32 %v917, %v1047
  %v1055 = vmul.f32 %v922, %v1047
  %v1056 = vmul.f32 %v927, %v1047
  %v1057 = vmul.f32 %v932, %v1047
  %v1058 = vmul.f32 %v937, %v1047
  %v1059 = vmul.f32 %v942, %v1047
  %v1060 = vmul.f32 %v947, %v1047
  %v1061 = vmul.f32 %v952, %v1047
  %v1062 = vmul.f32 %v957, %v1047
  %v1063 = vmul.f32 %v962, %v1047
  %v1064 = vmul.f32 %v967, %v1047
  %v1065 = vmul.f32 %v972, %v1047
  %v1066 = vmul.f32 %v977, %v1047
  %v1067 = vmul.f32 %v982, %v1047
  %v1068 = vmul.f32 %v987, %v1047
  %v1069 = vmul.f32 %v992, %v1047
  %v1070 = vmul.f32 %v997, %v1047
  %v1071 = vmul.f32 %v1002, %v1047
  %v1072 = vmul.f32 %v1007, %v1047
  %v1073 = vmul.f32 %v1012, %v1047
  %v1074 = vmul.f32 %v1017, %v1047
  %v1075 = vmul.f32 %v1022, %v1047
  %v1076 = vmul.f32 %v1027, %v1047
  %v1077 = vmul.f32 %v1032, %v1047
  %v1078 = vmul.f32 %v1037, %v1047
  %v1079 = vmul.f32 %v1042, %v1047
  %1112 = vrot.lane.b32.xlu0 %v819, 1
  %v1113 = vpop.permute.xlu0 %1112
  %1114 = vrot.lane.b32.xlu0 %v820, 1
  %v1115 = vpop.permute.xlu0 %1114
  %1116 = vrot.lane.b32.xlu0 %v821, 1
  %v1117 = vpop.permute.xlu0 %1116
  %1118 = vrot.lane.b32.xlu0 %v822, 1
  %v1119 = vpop.permute.xlu0 %1118
  %1120 = vrot.lane.b32.xlu0 %v823, 1
  %v1121 = vpop.permute.xlu0 %1120
  %1122 = vrot.lane.b32.xlu0 %v824, 1
  %v1123 = vpop.permute.xlu0 %1122
  %1124 = vrot.lane.b32.xlu0 %v825, 1
  %v1125 = vpop.permute.xlu0 %1124
  %1126 = vrot.lane.b32.xlu0 %v826, 1
  %v1127 = vpop.permute.xlu0 %1126
  %1128 = vrot.lane.b32.xlu0 %v827, 1
  %v1129 = vpop.permute.xlu0 %1128
  %1130 = vrot.lane.b32.xlu0 %v828, 1
  %v1131 = vpop.permute.xlu0 %1130
  %1132 = vrot.lane.b32.xlu0 %v829, 1
  %v1133 = vpop.permute.xlu0 %1132
  %1134 = vrot.lane.b32.xlu0 %v830, 1
  %v1135 = vpop.permute.xlu0 %1134
  %1136 = vrot.lane.b32.xlu0 %v831, 1
  %v1137 = vpop.permute.xlu0 %1136
  %1138 = vrot.lane.b32.xlu0 %v832, 1
  %v1139 = vpop.permute.xlu0 %1138
  %1140 = vrot.lane.b32.xlu0 %v833, 1
  %v1141 = vpop.permute.xlu0 %1140
  %1142 = vrot.lane.b32.xlu0 %v834, 1
  %v1143 = vpop.permute.xlu0 %1142
  %1144 = vrot.lane.b32.xlu0 %v835, 1
  %v1145 = vpop.permute.xlu0 %1144
  %1146 = vrot.lane.b32.xlu0 %v836, 1
  %v1147 = vpop.permute.xlu0 %1146
  %1148 = vrot.lane.b32.xlu0 %v837, 1
  %v1149 = vpop.permute.xlu0 %1148
  %1150 = vrot.lane.b32.xlu0 %v838, 1
  %v1151 = vpop.permute.xlu0 %1150
  %1152 = vrot.lane.b32.xlu0 %v839, 1
  %v1153 = vpop.permute.xlu0 %1152
  %1154 = vrot.lane.b32.xlu0 %v840, 1
  %v1155 = vpop.permute.xlu0 %1154
  %1156 = vrot.lane.b32.xlu0 %v841, 1
  %v1157 = vpop.permute.xlu0 %1156
  %1158 = vrot.lane.b32.xlu0 %v842, 1
  %v1159 = vpop.permute.xlu0 %1158
  %1160 = vrot.lane.b32.xlu0 %v843, 1
  %v1161 = vpop.permute.xlu0 %1160
  %1162 = vrot.lane.b32.xlu0 %v844, 1
  %v1163 = vpop.permute.xlu0 %1162
  %1164 = vrot.lane.b32.xlu0 %v845, 1
  %v1165 = vpop.permute.xlu0 %1164
  %1166 = vrot.lane.b32.xlu0 %v846, 1
  %v1167 = vpop.permute.xlu0 %1166
  %1168 = vrot.lane.b32.xlu0 %v847, 1
  %v1169 = vpop.permute.xlu0 %1168
  %1170 = vrot.lane.b32.xlu0 %v848, 1
  %v1171 = vpop.permute.xlu0 %1170
  %1172 = vrot.lane.b32.xlu0 %v849, 1
  %v1173 = vpop.permute.xlu0 %1172
  %1174 = vrot.lane.b32.xlu0 %v850, 1
  %v1175 = vpop.permute.xlu0 %1174
  %v1208 = vmul.f32 %v435, %v1113
  %v1209 = vmul.f32 %v436, %v1115
  %v1210 = vmul.f32 %v437, %v1117
  %v1211 = vmul.f32 %v438, %v1119
  %v1212 = vmul.f32 %v439, %v1121
  %v1213 = vmul.f32 %v440, %v1123
  %v1214 = vmul.f32 %v441, %v1125
  %v1215 = vmul.f32 %v442, %v1127
  %v1216 = vmul.f32 %v443, %v1129
  %v1217 = vmul.f32 %v444, %v1131
  %v1218 = vmul.f32 %v445, %v1133
  %v1219 = vmul.f32 %v446, %v1135
  %v1220 = vmul.f32 %v447, %v1137
  %v1221 = vmul.f32 %v448, %v1139
  %v1222 = vmul.f32 %v449, %v1141
  %v1223 = vmul.f32 %v450, %v1143
  %v1224 = vmul.f32 %v451, %v1145
  %v1225 = vmul.f32 %v452, %v1147
  %v1226 = vmul.f32 %v453, %v1149
  %v1227 = vmul.f32 %v454, %v1151
  %v1228 = vmul.f32 %v455, %v1153
  %v1229 = vmul.f32 %v456, %v1155
  %v1230 = vmul.f32 %v457, %v1157
  %v1231 = vmul.f32 %v458, %v1159
  %v1232 = vmul.f32 %v459, %v1161
  %v1233 = vmul.f32 %v460, %v1163
  %v1234 = vmul.f32 %v461, %v1165
  %v1235 = vmul.f32 %v462, %v1167
  %v1236 = vmul.f32 %v463, %v1169
  %v1237 = vmul.f32 %v464, %v1171
  %v1238 = vmul.f32 %v465, %v1173
  %v1239 = vmul.f32 %v466, %v1175
  %1241 = vset.pattern.permute.xlu0 1
  %1242 = vperm.xlu0 %1241, %v1208
  %v1243 = vpop.permute.xlu0 %1242
  %1246 = vset.pattern.permute.xlu0 1
  %1247 = vperm.xlu0 %1246, %v1209
  %v1248 = vpop.permute.xlu0 %1247
  %1251 = vset.pattern.permute.xlu0 1
  %1252 = vperm.xlu0 %1251, %v1210
  %v1253 = vpop.permute.xlu0 %1252
  %1256 = vset.pattern.permute.xlu0 1
  %1257 = vperm.xlu0 %1256, %v1211
  %v1258 = vpop.permute.xlu0 %1257
  %1261 = vset.pattern.permute.xlu0 1
  %1262 = vperm.xlu0 %1261, %v1212
  %v1263 = vpop.permute.xlu0 %1262
  %1266 = vset.pattern.permute.xlu0 1
  %1267 = vperm.xlu0 %1266, %v1213
  %v1268 = vpop.permute.xlu0 %1267
  %1271 = vset.pattern.permute.xlu0 1
  %1272 = vperm.xlu0 %1271, %v1214
  %v1273 = vpop.permute.xlu0 %1272
  %1276 = vset.pattern.permute.xlu0 1
  %1277 = vperm.xlu0 %1276, %v1215
  %v1278 = vpop.permute.xlu0 %1277
  %1281 = vset.pattern.permute.xlu0 1
  %1282 = vperm.xlu0 %1281, %v1216
  %v1283 = vpop.permute.xlu0 %1282
  %1286 = vset.pattern.permute.xlu0 1
  %1287 = vperm.xlu0 %1286, %v1217
  %v1288 = vpop.permute.xlu0 %1287
  %1291 = vset.pattern.permute.xlu0 1
  %1292 = vperm.xlu0 %1291, %v1218
  %v1293 = vpop.permute.xlu0 %1292
  %1296 = vset.pattern.permute.xlu0 1
  %1297 = vperm.xlu0 %1296, %v1219
  %v1298 = vpop.permute.xlu0 %1297
  %1301 = vset.pattern.permute.xlu0 1
  %1302 = vperm.xlu0 %1301, %v1220
  %v1303 = vpop.permute.xlu0 %1302
  %1306 = vset.pattern.permute.xlu0 1
  %1307 = vperm.xlu0 %1306, %v1221
  %v1308 = vpop.permute.xlu0 %1307
  %1311 = vset.pattern.permute.xlu0 1
  %1312 = vperm.xlu0 %1311, %v1222
  %v1313 = vpop.permute.xlu0 %1312
  %1316 = vset.pattern.permute.xlu0 1
  %1317 = vperm.xlu0 %1316, %v1223
  %v1318 = vpop.permute.xlu0 %1317
  %1321 = vset.pattern.permute.xlu0 1
  %1322 = vperm.xlu0 %1321, %v1224
  %v1323 = vpop.permute.xlu0 %1322
  %1326 = vset.pattern.permute.xlu0 1
  %1327 = vperm.xlu0 %1326, %v1225
  %v1328 = vpop.permute.xlu0 %1327
  %1331 = vset.pattern.permute.xlu0 1
  %1332 = vperm.xlu0 %1331, %v1226
  %v1333 = vpop.permute.xlu0 %1332
  %1336 = vset.pattern.permute.xlu0 1
  %1337 = vperm.xlu0 %1336, %v1227
  %v1338 = vpop.permute.xlu0 %1337
  %1341 = vset.pattern.permute.xlu0 1
  %1342 = vperm.xlu0 %1341, %v1228
  %v1343 = vpop.permute.xlu0 %1342
  %1346 = vset.pattern.permute.xlu0 1
  %1347 = vperm.xlu0 %1346, %v1229
  %v1348 = vpop.permute.xlu0 %1347
  %1351 = vset.pattern.permute.xlu0 1
  %1352 = vperm.xlu0 %1351, %v1230
  %v1353 = vpop.permute.xlu0 %1352
  %1356 = vset.pattern.permute.xlu0 1
  %1357 = vperm.xlu0 %1356, %v1231
  %v1358 = vpop.permute.xlu0 %1357
  %1361 = vset.pattern.permute.xlu0 1
  %1362 = vperm.xlu0 %1361, %v1232
  %v1363 = vpop.permute.xlu0 %1362
  %1366 = vset.pattern.permute.xlu0 1
  %1367 = vperm.xlu0 %1366, %v1233
  %v1368 = vpop.permute.xlu0 %1367
  %1371 = vset.pattern.permute.xlu0 1
  %1372 = vperm.xlu0 %1371, %v1234
  %v1373 = vpop.permute.xlu0 %1372
  %1376 = vset.pattern.permute.xlu0 1
  %1377 = vperm.xlu0 %1376, %v1235
  %v1378 = vpop.permute.xlu0 %1377
  %1381 = vset.pattern.permute.xlu0 1
  %1382 = vperm.xlu0 %1381, %v1236
  %v1383 = vpop.permute.xlu0 %1382
  %1386 = vset.pattern.permute.xlu0 1
  %1387 = vperm.xlu0 %1386, %v1237
  %v1388 = vpop.permute.xlu0 %1387
  %1391 = vset.pattern.permute.xlu0 1
  %1392 = vperm.xlu0 %1391, %v1238
  %v1393 = vpop.permute.xlu0 %1392
  %1396 = vset.pattern.permute.xlu0 1
  %1397 = vperm.xlu0 %1396, %v1239
  %v1398 = vpop.permute.xlu0 %1397
  %v1400 = vlaneseq
  %v1401 = vshrl.u32 %v1400, 7
  %v1402 = vsub.s32 1, %v1401
  %v1403 = vrot.slane %v851, %v1402
  %v1404 = vmul.f32 %v1243, %v1403
  %v1405 = vmul.f32 %v1248, %v1403
  %v1406 = vmul.f32 %v1253, %v1403
  %v1407 = vmul.f32 %v1258, %v1403
  %v1408 = vmul.f32 %v1263, %v1403
  %v1409 = vmul.f32 %v1268, %v1403
  %v1410 = vmul.f32 %v1273, %v1403
  %v1411 = vmul.f32 %v1278, %v1403
  %v1412 = vmul.f32 %v1283, %v1403
  %v1413 = vmul.f32 %v1288, %v1403
  %v1414 = vmul.f32 %v1293, %v1403
  %v1415 = vmul.f32 %v1298, %v1403
  %v1416 = vmul.f32 %v1303, %v1403
  %v1417 = vmul.f32 %v1308, %v1403
  %v1418 = vmul.f32 %v1313, %v1403
  %v1419 = vmul.f32 %v1318, %v1403
  %v1420 = vmul.f32 %v1323, %v1403
  %v1421 = vmul.f32 %v1328, %v1403
  %v1422 = vmul.f32 %v1333, %v1403
  %v1423 = vmul.f32 %v1338, %v1403
  %v1424 = vmul.f32 %v1343, %v1403
  %v1425 = vmul.f32 %v1348, %v1403
  %v1426 = vmul.f32 %v1353, %v1403
  %v1427 = vmul.f32 %v1358, %v1403
  %v1428 = vmul.f32 %v1363, %v1403
  %v1429 = vmul.f32 %v1368, %v1403
  %v1430 = vmul.f32 %v1373, %v1403
  %v1431 = vmul.f32 %v1378, %v1403
  %v1432 = vmul.f32 %v1383, %v1403
  %v1433 = vmul.f32 %v1388, %v1403
  %v1434 = vmul.f32 %v1393, %v1403
  %v1435 = vmul.f32 %v1398, %v1403
  %v1436 = vadd.f32 %v1048, %v1404
  %v1437 = vadd.f32 %v1049, %v1405
  %v1438 = vadd.f32 %v1050, %v1406
  %v1439 = vadd.f32 %v1051, %v1407
  %v1440 = vadd.f32 %v1052, %v1408
  %v1441 = vadd.f32 %v1053, %v1409
  %v1442 = vadd.f32 %v1054, %v1410
  %v1443 = vadd.f32 %v1055, %v1411
  %v1444 = vadd.f32 %v1056, %v1412
  %v1445 = vadd.f32 %v1057, %v1413
  %v1446 = vadd.f32 %v1058, %v1414
  %v1447 = vadd.f32 %v1059, %v1415
  %v1448 = vadd.f32 %v1060, %v1416
  %v1449 = vadd.f32 %v1061, %v1417
  %v1450 = vadd.f32 %v1062, %v1418
  %v1451 = vadd.f32 %v1063, %v1419
  %v1452 = vadd.f32 %v1064, %v1420
  %v1453 = vadd.f32 %v1065, %v1421
  %v1454 = vadd.f32 %v1066, %v1422
  %v1455 = vadd.f32 %v1067, %v1423
  %v1456 = vadd.f32 %v1068, %v1424
  %v1457 = vadd.f32 %v1069, %v1425
  %v1458 = vadd.f32 %v1070, %v1426
  %v1459 = vadd.f32 %v1071, %v1427
  %v1460 = vadd.f32 %v1072, %v1428
  %v1461 = vadd.f32 %v1073, %v1429
  %v1462 = vadd.f32 %v1074, %v1430
  %v1463 = vadd.f32 %v1075, %v1431
  %v1464 = vadd.f32 %v1076, %v1432
  %v1465 = vadd.f32 %v1077, %v1433
  %v1466 = vadd.f32 %v1078, %v1434
  %v1467 = vadd.f32 %v1079, %v1435
  %1468 = vrot.lane.b32.xlu0 %v819, 2
  %v1469 = vpop.permute.xlu0 %1468
  %1470 = vrot.lane.b32.xlu0 %v820, 2
  %v1471 = vpop.permute.xlu0 %1470
  %1472 = vrot.lane.b32.xlu0 %v821, 2
  %v1473 = vpop.permute.xlu0 %1472
  %1474 = vrot.lane.b32.xlu0 %v822, 2
  %v1475 = vpop.permute.xlu0 %1474
  %1476 = vrot.lane.b32.xlu0 %v823, 2
  %v1477 = vpop.permute.xlu0 %1476
  %1478 = vrot.lane.b32.xlu0 %v824, 2
  %v1479 = vpop.permute.xlu0 %1478
  %1480 = vrot.lane.b32.xlu0 %v825, 2
  %v1481 = vpop.permute.xlu0 %1480
  %1482 = vrot.lane.b32.xlu0 %v826, 2
  %v1483 = vpop.permute.xlu0 %1482
  %1484 = vrot.lane.b32.xlu0 %v827, 2
  %v1485 = vpop.permute.xlu0 %1484
  %1486 = vrot.lane.b32.xlu0 %v828, 2
  %v1487 = vpop.permute.xlu0 %1486
  %1488 = vrot.lane.b32.xlu0 %v829, 2
  %v1489 = vpop.permute.xlu0 %1488
  %1490 = vrot.lane.b32.xlu0 %v830, 2
  %v1491 = vpop.permute.xlu0 %1490
  %1492 = vrot.lane.b32.xlu0 %v831, 2
  %v1493 = vpop.permute.xlu0 %1492
  %1494 = vrot.lane.b32.xlu0 %v832, 2
  %v1495 = vpop.permute.xlu0 %1494
  %1496 = vrot.lane.b32.xlu0 %v833, 2
  %v1497 = vpop.permute.xlu0 %1496
  %1498 = vrot.lane.b32.xlu0 %v834, 2
  %v1499 = vpop.permute.xlu0 %1498
  %1500 = vrot.lane.b32.xlu0 %v835, 2
  %v1501 = vpop.permute.xlu0 %1500
  %1502 = vrot.lane.b32.xlu0 %v836, 2
  %v1503 = vpop.permute.xlu0 %1502
  %1504 = vrot.lane.b32.xlu0 %v837, 2
  %v1505 = vpop.permute.xlu0 %1504
  %1506 = vrot.lane.b32.xlu0 %v838, 2
  %v1507 = vpop.permute.xlu0 %1506
  %1508 = vrot.lane.b32.xlu0 %v839, 2
  %v1509 = vpop.permute.xlu0 %1508
  %1510 = vrot.lane.b32.xlu0 %v840, 2
  %v1511 = vpop.permute.xlu0 %1510
  %1512 = vrot.lane.b32.xlu0 %v841, 2
  %v1513 = vpop.permute.xlu0 %1512
  %1514 = vrot.lane.b32.xlu0 %v842, 2
  %v1515 = vpop.permute.xlu0 %1514
  %1516 = vrot.lane.b32.xlu0 %v843, 2
  %v1517 = vpop.permute.xlu0 %1516
  %1518 = vrot.lane.b32.xlu0 %v844, 2
  %v1519 = vpop.permute.xlu0 %1518
  %1520 = vrot.lane.b32.xlu0 %v845, 2
  %v1521 = vpop.permute.xlu0 %1520
  %1522 = vrot.lane.b32.xlu0 %v846, 2
  %v1523 = vpop.permute.xlu0 %1522
  %1524 = vrot.lane.b32.xlu0 %v847, 2
  %v1525 = vpop.permute.xlu0 %1524
  %1526 = vrot.lane.b32.xlu0 %v848, 2
  %v1527 = vpop.permute.xlu0 %1526
  %1528 = vrot.lane.b32.xlu0 %v849, 2
  %v1529 = vpop.permute.xlu0 %1528
  %1530 = vrot.lane.b32.xlu0 %v850, 2
  %v1531 = vpop.permute.xlu0 %1530
  %v1564 = vmul.f32 %v435, %v1469
  %v1565 = vmul.f32 %v436, %v1471
  %v1566 = vmul.f32 %v437, %v1473
  %v1567 = vmul.f32 %v438, %v1475
  %v1568 = vmul.f32 %v439, %v1477
  %v1569 = vmul.f32 %v440, %v1479
  %v1570 = vmul.f32 %v441, %v1481
  %v1571 = vmul.f32 %v442, %v1483
  %v1572 = vmul.f32 %v443, %v1485
  %v1573 = vmul.f32 %v444, %v1487
  %v1574 = vmul.f32 %v445, %v1489
  %v1575 = vmul.f32 %v446, %v1491
  %v1576 = vmul.f32 %v447, %v1493
  %v1577 = vmul.f32 %v448, %v1495
  %v1578 = vmul.f32 %v449, %v1497
  %v1579 = vmul.f32 %v450, %v1499
  %v1580 = vmul.f32 %v451, %v1501
  %v1581 = vmul.f32 %v452, %v1503
  %v1582 = vmul.f32 %v453, %v1505
  %v1583 = vmul.f32 %v454, %v1507
  %v1584 = vmul.f32 %v455, %v1509
  %v1585 = vmul.f32 %v456, %v1511
  %v1586 = vmul.f32 %v457, %v1513
  %v1587 = vmul.f32 %v458, %v1515
  %v1588 = vmul.f32 %v459, %v1517
  %v1589 = vmul.f32 %v460, %v1519
  %v1590 = vmul.f32 %v461, %v1521
  %v1591 = vmul.f32 %v462, %v1523
  %v1592 = vmul.f32 %v463, %v1525
  %v1593 = vmul.f32 %v464, %v1527
  %v1594 = vmul.f32 %v465, %v1529
  %v1595 = vmul.f32 %v466, %v1531
  %1597 = vset.pattern.permute.xlu0 2
  %1598 = vperm.xlu0 %1597, %v1564
  %v1599 = vpop.permute.xlu0 %1598
  %1602 = vset.pattern.permute.xlu0 2
  %1603 = vperm.xlu0 %1602, %v1565
  %v1604 = vpop.permute.xlu0 %1603
  %1607 = vset.pattern.permute.xlu0 2
  %1608 = vperm.xlu0 %1607, %v1566
  %v1609 = vpop.permute.xlu0 %1608
  %1612 = vset.pattern.permute.xlu0 2
  %1613 = vperm.xlu0 %1612, %v1567
  %v1614 = vpop.permute.xlu0 %1613
  %1617 = vset.pattern.permute.xlu0 2
  %1618 = vperm.xlu0 %1617, %v1568
  %v1619 = vpop.permute.xlu0 %1618
  %1622 = vset.pattern.permute.xlu0 2
  %1623 = vperm.xlu0 %1622, %v1569
  %v1624 = vpop.permute.xlu0 %1623
  %1627 = vset.pattern.permute.xlu0 2
  %1628 = vperm.xlu0 %1627, %v1570
  %v1629 = vpop.permute.xlu0 %1628
  %1632 = vset.pattern.permute.xlu0 2
  %1633 = vperm.xlu0 %1632, %v1571
  %v1634 = vpop.permute.xlu0 %1633
  %1637 = vset.pattern.permute.xlu0 2
  %1638 = vperm.xlu0 %1637, %v1572
  %v1639 = vpop.permute.xlu0 %1638
  %1642 = vset.pattern.permute.xlu0 2
  %1643 = vperm.xlu0 %1642, %v1573
  %v1644 = vpop.permute.xlu0 %1643
  %1647 = vset.pattern.permute.xlu0 2
  %1648 = vperm.xlu0 %1647, %v1574
  %v1649 = vpop.permute.xlu0 %1648
  %1652 = vset.pattern.permute.xlu0 2
  %1653 = vperm.xlu0 %1652, %v1575
  %v1654 = vpop.permute.xlu0 %1653
  %1657 = vset.pattern.permute.xlu0 2
  %1658 = vperm.xlu0 %1657, %v1576
  %v1659 = vpop.permute.xlu0 %1658
  %1662 = vset.pattern.permute.xlu0 2
  %1663 = vperm.xlu0 %1662, %v1577
  %v1664 = vpop.permute.xlu0 %1663
  %1667 = vset.pattern.permute.xlu0 2
  %1668 = vperm.xlu0 %1667, %v1578
  %v1669 = vpop.permute.xlu0 %1668
  %1672 = vset.pattern.permute.xlu0 2
  %1673 = vperm.xlu0 %1672, %v1579
  %v1674 = vpop.permute.xlu0 %1673
  %1677 = vset.pattern.permute.xlu0 2
  %1678 = vperm.xlu0 %1677, %v1580
  %v1679 = vpop.permute.xlu0 %1678
  %1682 = vset.pattern.permute.xlu0 2
  %1683 = vperm.xlu0 %1682, %v1581
  %v1684 = vpop.permute.xlu0 %1683
  %1687 = vset.pattern.permute.xlu0 2
  %1688 = vperm.xlu0 %1687, %v1582
  %v1689 = vpop.permute.xlu0 %1688
  %1692 = vset.pattern.permute.xlu0 2
  %1693 = vperm.xlu0 %1692, %v1583
  %v1694 = vpop.permute.xlu0 %1693
  %1697 = vset.pattern.permute.xlu0 2
  %1698 = vperm.xlu0 %1697, %v1584
  %v1699 = vpop.permute.xlu0 %1698
  %1702 = vset.pattern.permute.xlu0 2
  %1703 = vperm.xlu0 %1702, %v1585
  %v1704 = vpop.permute.xlu0 %1703
  %1707 = vset.pattern.permute.xlu0 2
  %1708 = vperm.xlu0 %1707, %v1586
  %v1709 = vpop.permute.xlu0 %1708
  %1712 = vset.pattern.permute.xlu0 2
  %1713 = vperm.xlu0 %1712, %v1587
  %v1714 = vpop.permute.xlu0 %1713
  %1717 = vset.pattern.permute.xlu0 2
  %1718 = vperm.xlu0 %1717, %v1588
  %v1719 = vpop.permute.xlu0 %1718
  %1722 = vset.pattern.permute.xlu0 2
  %1723 = vperm.xlu0 %1722, %v1589
  %v1724 = vpop.permute.xlu0 %1723
  %1727 = vset.pattern.permute.xlu0 2
  %1728 = vperm.xlu0 %1727, %v1590
  %v1729 = vpop.permute.xlu0 %1728
  %1732 = vset.pattern.permute.xlu0 2
  %1733 = vperm.xlu0 %1732, %v1591
  %v1734 = vpop.permute.xlu0 %1733
  %1737 = vset.pattern.permute.xlu0 2
  %1738 = vperm.xlu0 %1737, %v1592
  %v1739 = vpop.permute.xlu0 %1738
  %1742 = vset.pattern.permute.xlu0 2
  %1743 = vperm.xlu0 %1742, %v1593
  %v1744 = vpop.permute.xlu0 %1743
  %1747 = vset.pattern.permute.xlu0 2
  %1748 = vperm.xlu0 %1747, %v1594
  %v1749 = vpop.permute.xlu0 %1748
  %1752 = vset.pattern.permute.xlu0 2
  %1753 = vperm.xlu0 %1752, %v1595
  %v1754 = vpop.permute.xlu0 %1753
  %v1756 = vlaneseq
  %v1757 = vshrl.u32 %v1756, 7
  %v1758 = vsub.s32 2, %v1757
  %v1759 = vrot.slane %v851, %v1758
  %v1760 = vmul.f32 %v1599, %v1759
  %v1761 = vmul.f32 %v1604, %v1759
  %v1762 = vmul.f32 %v1609, %v1759
  %v1763 = vmul.f32 %v1614, %v1759
  %v1764 = vmul.f32 %v1619, %v1759
  %v1765 = vmul.f32 %v1624, %v1759
  %v1766 = vmul.f32 %v1629, %v1759
  %v1767 = vmul.f32 %v1634, %v1759
  %v1768 = vmul.f32 %v1639, %v1759
  %v1769 = vmul.f32 %v1644, %v1759
  %v1770 = vmul.f32 %v1649, %v1759
  %v1771 = vmul.f32 %v1654, %v1759
  %v1772 = vmul.f32 %v1659, %v1759
  %v1773 = vmul.f32 %v1664, %v1759
  %v1774 = vmul.f32 %v1669, %v1759
  %v1775 = vmul.f32 %v1674, %v1759
  %v1776 = vmul.f32 %v1679, %v1759
  %v1777 = vmul.f32 %v1684, %v1759
  %v1778 = vmul.f32 %v1689, %v1759
  %v1779 = vmul.f32 %v1694, %v1759
  %v1780 = vmul.f32 %v1699, %v1759
  %v1781 = vmul.f32 %v1704, %v1759
  %v1782 = vmul.f32 %v1709, %v1759
  %v1783 = vmul.f32 %v1714, %v1759
  %v1784 = vmul.f32 %v1719, %v1759
  %v1785 = vmul.f32 %v1724, %v1759
  %v1786 = vmul.f32 %v1729, %v1759
  %v1787 = vmul.f32 %v1734, %v1759
  %v1788 = vmul.f32 %v1739, %v1759
  %v1789 = vmul.f32 %v1744, %v1759
  %v1790 = vmul.f32 %v1749, %v1759
  %v1791 = vmul.f32 %v1754, %v1759
  %v1792 = vadd.f32 %v1436, %v1760
  %v1793 = vadd.f32 %v1437, %v1761
  %v1794 = vadd.f32 %v1438, %v1762
  %v1795 = vadd.f32 %v1439, %v1763
  %v1796 = vadd.f32 %v1440, %v1764
  %v1797 = vadd.f32 %v1441, %v1765
  %v1798 = vadd.f32 %v1442, %v1766
  %v1799 = vadd.f32 %v1443, %v1767
  %v1800 = vadd.f32 %v1444, %v1768
  %v1801 = vadd.f32 %v1445, %v1769
  %v1802 = vadd.f32 %v1446, %v1770
  %v1803 = vadd.f32 %v1447, %v1771
  %v1804 = vadd.f32 %v1448, %v1772
  %v1805 = vadd.f32 %v1449, %v1773
  %v1806 = vadd.f32 %v1450, %v1774
  %v1807 = vadd.f32 %v1451, %v1775
  %v1808 = vadd.f32 %v1452, %v1776
  %v1809 = vadd.f32 %v1453, %v1777
  %v1810 = vadd.f32 %v1454, %v1778
  %v1811 = vadd.f32 %v1455, %v1779
  %v1812 = vadd.f32 %v1456, %v1780
  %v1813 = vadd.f32 %v1457, %v1781
  %v1814 = vadd.f32 %v1458, %v1782
  %v1815 = vadd.f32 %v1459, %v1783
  %v1816 = vadd.f32 %v1460, %v1784
  %v1817 = vadd.f32 %v1461, %v1785
  %v1818 = vadd.f32 %v1462, %v1786
  %v1819 = vadd.f32 %v1463, %v1787
  %v1820 = vadd.f32 %v1464, %v1788
  %v1821 = vadd.f32 %v1465, %v1789
  %v1822 = vadd.f32 %v1466, %v1790
  %v1823 = vadd.f32 %v1467, %v1791
  %v1824 = vld [vmem:[%s4] sm:$0xff]
  %v1825 = vld [vmem:[%s4 + $0x8] sm:$0xff]
  %v1826 = vld [vmem:[%s4 + $0x10] sm:$0xff]
  %v1827 = vld [vmem:[%s4 + $0x18] sm:$0xff]
  %v1828 = vld [vmem:[%s4 + $0x20] sm:$0xff]
  %v1829 = vld [vmem:[%s4 + $0x28] sm:$0xff]
  %v1830 = vld [vmem:[%s4 + $0x30] sm:$0xff]
  %v1831 = vld [vmem:[%s4 + $0x38] sm:$0xff]
  %v1832 = vld [vmem:[%s4 + $0x40] sm:$0xff]
  %v1833 = vld [vmem:[%s4 + $0x48] sm:$0xff]
  %v1834 = vld [vmem:[%s4 + $0x50] sm:$0xff]
  %v1835 = vld [vmem:[%s4 + $0x58] sm:$0xff]
  %v1836 = vld [vmem:[%s4 + $0x60] sm:$0xff]
  %v1837 = vld [vmem:[%s4 + $0x68] sm:$0xff]
  %v1838 = vld [vmem:[%s4 + $0x70] sm:$0xff]
  %v1839 = vld [vmem:[%s4 + $0x78] sm:$0xff]
  %1840 = vmatprep.subr.mxu0 0.0
  %1841 = vmatpush1.msra.mxu0 %v1824
  %1842 = vmatprep.subr.mxu0 0.0
  %1843 = vmatpush1.msra.mxu0 %v1825
  %1844 = vmatprep.subr.mxu0 0.0
  %1845 = vmatpush1.msra.mxu0 %v1826
  %1846 = vmatprep.subr.mxu0 0.0
  %1847 = vmatpush1.msra.mxu0 %v1827
  %1848 = vmatprep.subr.mxu0 0.0
  %1849 = vmatpush1.msra.mxu0 %v1828
  %1850 = vmatprep.subr.mxu0 0.0
  %1851 = vmatpush1.msra.mxu0 %v1829
  %1852 = vmatprep.subr.mxu0 0.0
  %1853 = vmatpush1.msra.mxu0 %v1830
  %1854 = vmatprep.subr.mxu0 0.0
  %1855 = vmatpush1.msra.mxu0 %v1831
  %1856 = vmatprep.subr.mxu0 0.0
  %1857 = vmatpush1.msra.mxu0 %v1832
  %1858 = vmatprep.subr.mxu0 0.0
  %1859 = vmatpush1.msra.mxu0 %v1833
  %1860 = vmatprep.subr.mxu0 0.0
  %1861 = vmatpush1.msra.mxu0 %v1834
  %1862 = vmatprep.subr.mxu0 0.0
  %1863 = vmatpush1.msra.mxu0 %v1835
  %1864 = vmatprep.subr.mxu0 0.0
  %1865 = vmatpush1.msra.mxu0 %v1836
  %1866 = vmatprep.subr.mxu0 0.0
  %1867 = vmatpush1.msra.mxu0 %v1837
  %1868 = vmatprep.subr.mxu0 0.0
  %1869 = vmatpush1.msra.mxu0 %v1838
  %1870 = vmatprep.subr.mxu0 0.0
  %1871 = vmatpush1.msra.mxu0 %v1839
  %1872 = vmatprep.subr.mxu0 0.0
  %1873 = vmatpush1.msra.mxu0 0.0
  %1874 = vmatprep.subr.mxu0 0.0
  %1875 = vmatpush1.msra.mxu0 0.0
  %1876 = vmatprep.subr.mxu0 0.0
  %1877 = vmatpush1.msra.mxu0 0.0
  %1878 = vmatprep.subr.mxu0 0.0
  %1879 = vmatpush1.msra.mxu0 0.0
  %1880 = vmatprep.subr.mxu0 0.0
  %1881 = vmatpush1.msra.mxu0 0.0
  %1882 = vmatprep.subr.mxu0 0.0
  %1883 = vmatpush1.msra.mxu0 0.0
  %1884 = vmatprep.subr.mxu0 0.0
  %1885 = vmatpush1.msra.mxu0 0.0
  %1886 = vmatprep.subr.mxu0 0.0
  %1887 = vmatpush1.msra.mxu0 0.0
  %1888 = vmatprep.subr.mxu0 0.0
  %1889 = vmatpush1.msra.mxu0 0.0
  %1890 = vmatprep.subr.mxu0 0.0
  %1891 = vmatpush1.msra.mxu0 0.0
  %1892 = vmatprep.subr.mxu0 0.0
  %1893 = vmatpush1.msra.mxu0 0.0
  %1894 = vmatprep.subr.mxu0 0.0
  %1895 = vmatpush1.msra.mxu0 0.0
  %1896 = vmatprep.subr.mxu0 0.0
  %1897 = vmatpush1.msra.mxu0 0.0
  %1898 = vmatprep.subr.mxu0 0.0
  %1899 = vmatpush1.msra.mxu0 0.0
  %1900 = vmatprep.subr.mxu0 0.0
  %1901 = vmatpush1.msra.mxu0 0.0
  %1902 = vmatprep.subr.mxu0 0.0
  %1903 = vmatpush1.msra.mxu0 0.0
  %1904 = vmatprep.mubr.f32.mxu0 0.0
  %1905 = vmatmul.mubr.f32.gmra.mrb[0].mxu0 %v403
  %v1906 = vpop.f32.mrb[0].mxu0
  %v1907 = vadd.f32 %v1792, %v1906
  %v1908 = vpop.f32.mrb[0].mxu0
  %1909 = vmatprep.mubr.f32.mxu0 0.0
  %1910 = vmatmul.mubr.f32.gmra.mrb[0].mxu0 %v404
  %v1911 = vpop.f32.mrb[0].mxu0
  %v1912 = vadd.f32 %v1793, %v1911
  %v1913 = vpop.f32.mrb[0].mxu0
  %1914 = vmatprep.mubr.f32.mxu0 0.0
  %1915 = vmatmul.mubr.f32.gmra.mrb[0].mxu0 %v405
  %v1916 = vpop.f32.mrb[0].mxu0
  %v1917 = vadd.f32 %v1794, %v1916
  %v1918 = vpop.f32.mrb[0].mxu0
  %1919 = vmatprep.mubr.f32.mxu0 0.0
  %1920 = vmatmul.mubr.f32.gmra.mrb[0].mxu0 %v406
  %v1921 = vpop.f32.mrb[0].mxu0
  %v1922 = vadd.f32 %v1795, %v1921
  %v1923 = vpop.f32.mrb[0].mxu0
  %1924 = vmatprep.mubr.f32.mxu0 0.0
  %1925 = vmatmul.mubr.f32.gmra.mrb[0].mxu0 %v407
  %v1926 = vpop.f32.mrb[0].mxu0
  %v1927 = vadd.f32 %v1796, %v1926
  %v1928 = vpop.f32.mrb[0].mxu0
  %1929 = vmatprep.mubr.f32.mxu0 0.0
  %1930 = vmatmul.mubr.f32.gmra.mrb[0].mxu0 %v408
  %v1931 = vpop.f32.mrb[0].mxu0
  %v1932 = vadd.f32 %v1797, %v1931
  %v1933 = vpop.f32.mrb[0].mxu0
  %1934 = vmatprep.mubr.f32.mxu0 0.0
  %1935 = vmatmul.mubr.f32.gmra.mrb[0].mxu0 %v409
  %v1936 = vpop.f32.mrb[0].mxu0
  %v1937 = vadd.f32 %v1798, %v1936
  %v1938 = vpop.f32.mrb[0].mxu0
  %1939 = vmatprep.mubr.f32.mxu0 0.0
  %1940 = vmatmul.mubr.f32.gmra.mrb[0].mxu0 %v410
  %v1941 = vpop.f32.mrb[0].mxu0
  %v1942 = vadd.f32 %v1799, %v1941
  %v1943 = vpop.f32.mrb[0].mxu0
  %1944 = vmatprep.mubr.f32.mxu0 0.0
  %1945 = vmatmul.mubr.f32.gmra.mrb[0].mxu0 %v411
  %v1946 = vpop.f32.mrb[0].mxu0
  %v1947 = vadd.f32 %v1800, %v1946
  %v1948 = vpop.f32.mrb[0].mxu0
  %1949 = vmatprep.mubr.f32.mxu0 0.0
  %1950 = vmatmul.mubr.f32.gmra.mrb[0].mxu0 %v412
  %v1951 = vpop.f32.mrb[0].mxu0
  %v1952 = vadd.f32 %v1801, %v1951
  %v1953 = vpop.f32.mrb[0].mxu0
  %1954 = vmatprep.mubr.f32.mxu0 0.0
  %1955 = vmatmul.mubr.f32.gmra.mrb[0].mxu0 %v413
  %v1956 = vpop.f32.mrb[0].mxu0
  %v1957 = vadd.f32 %v1802, %v1956
  %v1958 = vpop.f32.mrb[0].mxu0
  %1959 = vmatprep.mubr.f32.mxu0 0.0
  %1960 = vmatmul.mubr.f32.gmra.mrb[0].mxu0 %v414
  %v1961 = vpop.f32.mrb[0].mxu0
  %v1962 = vadd.f32 %v1803, %v1961
  %v1963 = vpop.f32.mrb[0].mxu0
  %1964 = vmatprep.mubr.f32.mxu0 0.0
  %1965 = vmatmul.mubr.f32.gmra.mrb[0].mxu0 %v415
  %v1966 = vpop.f32.mrb[0].mxu0
  %v1967 = vadd.f32 %v1804, %v1966
  %v1968 = vpop.f32.mrb[0].mxu0
  %1969 = vmatprep.mubr.f32.mxu0 0.0
  %1970 = vmatmul.mubr.f32.gmra.mrb[0].mxu0 %v416
  %v1971 = vpop.f32.mrb[0].mxu0
  %v1972 = vadd.f32 %v1805, %v1971
  %v1973 = vpop.f32.mrb[0].mxu0
  %1974 = vmatprep.mubr.f32.mxu0 0.0
  %1975 = vmatmul.mubr.f32.gmra.mrb[0].mxu0 %v417
  %v1976 = vpop.f32.mrb[0].mxu0
  %v1977 = vadd.f32 %v1806, %v1976
  %v1978 = vpop.f32.mrb[0].mxu0
  %1979 = vmatprep.mubr.f32.mxu0 0.0
  %1980 = vmatmul.mubr.f32.gmra.mrb[0].mxu0 %v418
  %v1981 = vpop.f32.mrb[0].mxu0
  %v1982 = vadd.f32 %v1807, %v1981
  %v1983 = vpop.f32.mrb[0].mxu0
  %1984 = vmatprep.mubr.f32.mxu0 0.0
  %1985 = vmatmul.mubr.f32.gmra.mrb[0].mxu0 %v419
  %v1986 = vpop.f32.mrb[0].mxu0
  %v1987 = vadd.f32 %v1808, %v1986
  %v1988 = vpop.f32.mrb[0].mxu0
  %1989 = vmatprep.mubr.f32.mxu0 0.0
  %1990 = vmatmul.mubr.f32.gmra.mrb[0].mxu0 %v420
  %v1991 = vpop.f32.mrb[0].mxu0
  %v1992 = vadd.f32 %v1809, %v1991
  %v1993 = vpop.f32.mrb[0].mxu0
  %1994 = vmatprep.mubr.f32.mxu0 0.0
  %1995 = vmatmul.mubr.f32.gmra.mrb[0].mxu0 %v421
  %v1996 = vpop.f32.mrb[0].mxu0
  %v1997 = vadd.f32 %v1810, %v1996
  %v1998 = vpop.f32.mrb[0].mxu0
  %1999 = vmatprep.mubr.f32.mxu0 0.0
  %2000 = vmatmul.mubr.f32.gmra.mrb[0].mxu0 %v422
  %v2001 = vpop.f32.mrb[0].mxu0
  %v2002 = vadd.f32 %v1811, %v2001
  %v2003 = vpop.f32.mrb[0].mxu0
  %2004 = vmatprep.mubr.f32.mxu0 0.0
  %2005 = vmatmul.mubr.f32.gmra.mrb[0].mxu0 %v423
  %v2006 = vpop.f32.mrb[0].mxu0
  %v2007 = vadd.f32 %v1812, %v2006
  %v2008 = vpop.f32.mrb[0].mxu0
  %2009 = vmatprep.mubr.f32.mxu0 0.0
  %2010 = vmatmul.mubr.f32.gmra.mrb[0].mxu0 %v424
  %v2011 = vpop.f32.mrb[0].mxu0
  %v2012 = vadd.f32 %v1813, %v2011
  %v2013 = vpop.f32.mrb[0].mxu0
  %2014 = vmatprep.mubr.f32.mxu0 0.0
  %2015 = vmatmul.mubr.f32.gmra.mrb[0].mxu0 %v425
  %v2016 = vpop.f32.mrb[0].mxu0
  %v2017 = vadd.f32 %v1814, %v2016
  %v2018 = vpop.f32.mrb[0].mxu0
  %2019 = vmatprep.mubr.f32.mxu0 0.0
  %2020 = vmatmul.mubr.f32.gmra.mrb[0].mxu0 %v426
  %v2021 = vpop.f32.mrb[0].mxu0
  %v2022 = vadd.f32 %v1815, %v2021
  %v2023 = vpop.f32.mrb[0].mxu0
  %2024 = vmatprep.mubr.f32.mxu0 0.0
  %2025 = vmatmul.mubr.f32.gmra.mrb[0].mxu0 %v427
  %v2026 = vpop.f32.mrb[0].mxu0
  %v2027 = vadd.f32 %v1816, %v2026
  %v2028 = vpop.f32.mrb[0].mxu0
  %2029 = vmatprep.mubr.f32.mxu0 0.0
  %2030 = vmatmul.mubr.f32.gmra.mrb[0].mxu0 %v428
  %v2031 = vpop.f32.mrb[0].mxu0
  %v2032 = vadd.f32 %v1817, %v2031
  %v2033 = vpop.f32.mrb[0].mxu0
  %2034 = vmatprep.mubr.f32.mxu0 0.0
  %2035 = vmatmul.mubr.f32.gmra.mrb[0].mxu0 %v429
  %v2036 = vpop.f32.mrb[0].mxu0
  %v2037 = vadd.f32 %v1818, %v2036
  %v2038 = vpop.f32.mrb[0].mxu0
  %2039 = vmatprep.mubr.f32.mxu0 0.0
  %2040 = vmatmul.mubr.f32.gmra.mrb[0].mxu0 %v430
  %v2041 = vpop.f32.mrb[0].mxu0
  %v2042 = vadd.f32 %v1819, %v2041
  %v2043 = vpop.f32.mrb[0].mxu0
  %2044 = vmatprep.mubr.f32.mxu0 0.0
  %2045 = vmatmul.mubr.f32.gmra.mrb[0].mxu0 %v431
  %v2046 = vpop.f32.mrb[0].mxu0
  %v2047 = vadd.f32 %v1820, %v2046
  %v2048 = vpop.f32.mrb[0].mxu0
  %2049 = vmatprep.mubr.f32.mxu0 0.0
  %2050 = vmatmul.mubr.f32.gmra.mrb[0].mxu0 %v432
  %v2051 = vpop.f32.mrb[0].mxu0
  %v2052 = vadd.f32 %v1821, %v2051
  %v2053 = vpop.f32.mrb[0].mxu0
  %2054 = vmatprep.mubr.f32.mxu0 0.0
  %2055 = vmatmul.mubr.f32.gmra.mrb[0].mxu0 %v433
  %v2056 = vpop.f32.mrb[0].mxu0
  %v2057 = vadd.f32 %v1822, %v2056
  %v2058 = vpop.f32.mrb[0].mxu0
  %2059 = vmatprep.mubr.f32.mxu0 0.0
  %2060 = vmatmul.mubr.f32.gmra.mrb[0].mxu0 %v434
  %v2061 = vpop.f32.mrb[0].mxu0
  %v2062 = vadd.f32 %v1823, %v2061
  %v2063 = vpop.f32.mrb[0].mxu0
  %2064 = vdwg.mxu0
  %v2065 = vld [vmem:[%s5] sm:$0x1]
  %v2067 = vlaneseq
  %v2068 = vshrl.u32 %v2067, 7
  %v2069 = vsub.s32 0, %v2068
  %v2070 = vrot.slane %v2065, %v2069
  %v2072 = vadd.f32 %v1907, %v2070
  %v2073 = vadd.f32 %v1912, %v2070
  %v2074 = vadd.f32 %v1917, %v2070
  %v2075 = vadd.f32 %v1922, %v2070
  %v2076 = vadd.f32 %v1927, %v2070
  %v2077 = vadd.f32 %v1932, %v2070
  %v2078 = vadd.f32 %v1937, %v2070
  %v2079 = vadd.f32 %v1942, %v2070
  %v2080 = vadd.f32 %v1947, %v2070
  %v2081 = vadd.f32 %v1952, %v2070
  %v2082 = vadd.f32 %v1957, %v2070
  %v2083 = vadd.f32 %v1962, %v2070
  %v2084 = vadd.f32 %v1967, %v2070
  %v2085 = vadd.f32 %v1972, %v2070
  %v2086 = vadd.f32 %v1977, %v2070
  %v2087 = vadd.f32 %v1982, %v2070
  %v2088 = vadd.f32 %v1987, %v2070
  %v2089 = vadd.f32 %v1992, %v2070
  %v2090 = vadd.f32 %v1997, %v2070
  %v2091 = vadd.f32 %v2002, %v2070
  %v2092 = vadd.f32 %v2007, %v2070
  %v2093 = vadd.f32 %v2012, %v2070
  %v2094 = vadd.f32 %v2017, %v2070
  %v2095 = vadd.f32 %v2022, %v2070
  %v2096 = vadd.f32 %v2027, %v2070
  %v2097 = vadd.f32 %v2032, %v2070
  %v2098 = vadd.f32 %v2037, %v2070
  %v2099 = vadd.f32 %v2042, %v2070
  %v2100 = vadd.f32 %v2047, %v2070
  %v2101 = vadd.f32 %v2052, %v2070
  %v2102 = vadd.f32 %v2057, %v2070
  %v2103 = vadd.f32 %v2062, %v2070
  %v2104 = vmax.f32 %v2072, 0.0
  %v2105 = vmax.f32 %v2073, 0.0
  %v2106 = vmax.f32 %v2074, 0.0
  %v2107 = vmax.f32 %v2075, 0.0
  %v2108 = vmax.f32 %v2076, 0.0
  %v2109 = vmax.f32 %v2077, 0.0
  %v2110 = vmax.f32 %v2078, 0.0
  %v2111 = vmax.f32 %v2079, 0.0
  %v2112 = vmax.f32 %v2080, 0.0
  %v2113 = vmax.f32 %v2081, 0.0
  %v2114 = vmax.f32 %v2082, 0.0
  %v2115 = vmax.f32 %v2083, 0.0
  %v2116 = vmax.f32 %v2084, 0.0
  %v2117 = vmax.f32 %v2085, 0.0
  %v2118 = vmax.f32 %v2086, 0.0
  %v2119 = vmax.f32 %v2087, 0.0
  %v2120 = vmax.f32 %v2088, 0.0
  %v2121 = vmax.f32 %v2089, 0.0
  %v2122 = vmax.f32 %v2090, 0.0
  %v2123 = vmax.f32 %v2091, 0.0
  %v2124 = vmax.f32 %v2092, 0.0
  %v2125 = vmax.f32 %v2093, 0.0
  %v2126 = vmax.f32 %v2094, 0.0
  %v2127 = vmax.f32 %v2095, 0.0
  %v2128 = vmax.f32 %v2096, 0.0
  %v2129 = vmax.f32 %v2097, 0.0
  %v2130 = vmax.f32 %v2098, 0.0
  %v2131 = vmax.f32 %v2099, 0.0
  %v2132 = vmax.f32 %v2100, 0.0
  %v2133 = vmax.f32 %v2101, 0.0
  %v2134 = vmax.f32 %v2102, 0.0
  %v2135 = vmax.f32 %v2103, 0.0
  %v2136 = vld [vmem:[%s7] sm:$0xff]
  %v2137 = vld [vmem:[%s7 + $0x8] sm:$0xff]
  %v2138 = vld [vmem:[%s7 + $0x10] sm:$0xff]
  %v2139 = vld [vmem:[%s7 + $0x18] sm:$0xff]
  %v2140 = vld [vmem:[%s7 + $0x20] sm:$0xff]
  %v2141 = vld [vmem:[%s7 + $0x28] sm:$0xff]
  %v2142 = vld [vmem:[%s7 + $0x30] sm:$0xff]
  %v2143 = vld [vmem:[%s7 + $0x38] sm:$0xff]
  %v2144 = vld [vmem:[%s7 + $0x40] sm:$0xff]
  %v2145 = vld [vmem:[%s7 + $0x48] sm:$0xff]
  %v2146 = vld [vmem:[%s7 + $0x50] sm:$0xff]
  %v2147 = vld [vmem:[%s7 + $0x58] sm:$0xff]
  %v2148 = vld [vmem:[%s7 + $0x60] sm:$0xff]
  %v2149 = vld [vmem:[%s7 + $0x68] sm:$0xff]
  %v2150 = vld [vmem:[%s7 + $0x70] sm:$0xff]
  %v2151 = vld [vmem:[%s7 + $0x78] sm:$0xff]
  %v2152 = vld [vmem:[%s8] sm:$0x1]
  %v2154 = vlaneseq
  %v2155 = vshrl.u32 %v2154, 7
  %v2156 = vsub.s32 0, %v2155
  %v2157 = vrot.slane %v2152, %v2156
  %2159 = vmatprep.subr.mxu0 0.0
  %2160 = vmatpush1.msra.mxu0 %v2136
  %2161 = vmatprep.subr.mxu0 0.0
  %2162 = vmatpush1.msra.mxu0 %v2137
  %2163 = vmatprep.subr.mxu0 0.0
  %2164 = vmatpush1.msra.mxu0 %v2138
  %2165 = vmatprep.subr.mxu0 0.0
  %2166 = vmatpush1.msra.mxu0 %v2139
  %2167 = vmatprep.subr.mxu0 0.0
  %2168 = vmatpush1.msra.mxu0 %v2140
  %2169 = vmatprep.subr.mxu0 0.0
  %2170 = vmatpush1.msra.mxu0 %v2141
  %2171 = vmatprep.subr.mxu0 0.0
  %2172 = vmatpush1.msra.mxu0 %v2142
  %2173 = vmatprep.subr.mxu0 0.0
  %2174 = vmatpush1.msra.mxu0 %v2143
  %2175 = vmatprep.subr.mxu0 0.0
  %2176 = vmatpush1.msra.mxu0 %v2144
  %2177 = vmatprep.subr.mxu0 0.0
  %2178 = vmatpush1.msra.mxu0 %v2145
  %2179 = vmatprep.subr.mxu0 0.0
  %2180 = vmatpush1.msra.mxu0 %v2146
  %2181 = vmatprep.subr.mxu0 0.0
  %2182 = vmatpush1.msra.mxu0 %v2147
  %2183 = vmatprep.subr.mxu0 0.0
  %2184 = vmatpush1.msra.mxu0 %v2148
  %2185 = vmatprep.subr.mxu0 0.0
  %2186 = vmatpush1.msra.mxu0 %v2149
  %2187 = vmatprep.subr.mxu0 0.0
  %2188 = vmatpush1.msra.mxu0 %v2150
  %2189 = vmatprep.subr.mxu0 0.0
  %2190 = vmatpush1.msra.mxu0 %v2151
  %2191 = vmatprep.subr.mxu0 0.0
  %2192 = vmatpush1.msra.mxu0 0.0
  %2193 = vmatprep.subr.mxu0 0.0
  %2194 = vmatpush1.msra.mxu0 0.0
  %2195 = vmatprep.subr.mxu0 0.0
  %2196 = vmatpush1.msra.mxu0 0.0
  %2197 = vmatprep.subr.mxu0 0.0
  %2198 = vmatpush1.msra.mxu0 0.0
  %2199 = vmatprep.subr.mxu0 0.0
  %2200 = vmatpush1.msra.mxu0 0.0
  %2201 = vmatprep.subr.mxu0 0.0
  %2202 = vmatpush1.msra.mxu0 0.0
  %2203 = vmatprep.subr.mxu0 0.0
  %2204 = vmatpush1.msra.mxu0 0.0
  %2205 = vmatprep.subr.mxu0 0.0
  %2206 = vmatpush1.msra.mxu0 0.0
  %2207 = vmatprep.subr.mxu0 0.0
  %2208 = vmatpush1.msra.mxu0 0.0
  %2209 = vmatprep.subr.mxu0 0.0
  %2210 = vmatpush1.msra.mxu0 0.0
  %2211 = vmatprep.subr.mxu0 0.0
  %2212 = vmatpush1.msra.mxu0 0.0
  %2213 = vmatprep.subr.mxu0 0.0
  %2214 = vmatpush1.msra.mxu0 0.0
  %2215 = vmatprep.subr.mxu0 0.0
  %2216 = vmatpush1.msra.mxu0 0.0
  %2217 = vmatprep.subr.mxu0 0.0
  %2218 = vmatpush1.msra.mxu0 0.0
  %2219 = vmatprep.subr.mxu0 0.0
  %2220 = vmatpush1.msra.mxu0 0.0
  %2221 = vmatprep.subr.mxu0 0.0
  %2222 = vmatpush1.msra.mxu0 0.0
  %2223 = vmatprep.mubr.f32.mxu0 0.0
  %2224 = vmatmul.mubr.f32.gmra.mrb[0].mxu0 %v2104
  %v2225 = vpop.f32.mrb[0].mxu0
  %v2226 = vadd.f32 %v2157, %v2225
  %v2227 = vpop.f32.mrb[0].mxu0
  %2228 = vmatprep.mubr.f32.mxu0 0.0
  %2229 = vmatmul.mubr.f32.gmra.mrb[0].mxu0 %v2105
  %v2230 = vpop.f32.mrb[0].mxu0
  %v2231 = vadd.f32 %v2157, %v2230
  %v2232 = vpop.f32.mrb[0].mxu0
  %2233 = vmatprep.mubr.f32.mxu0 0.0
  %2234 = vmatmul.mubr.f32.gmra.mrb[0].mxu0 %v2106
  %v2235 = vpop.f32.mrb[0].mxu0
  %v2236 = vadd.f32 %v2157, %v2235
  %v2237 = vpop.f32.mrb[0].mxu0
  %2238 = vmatprep.mubr.f32.mxu0 0.0
  %2239 = vmatmul.mubr.f32.gmra.mrb[0].mxu0 %v2107
  %v2240 = vpop.f32.mrb[0].mxu0
  %v2241 = vadd.f32 %v2157, %v2240
  %v2242 = vpop.f32.mrb[0].mxu0
  %2243 = vmatprep.mubr.f32.mxu0 0.0
  %2244 = vmatmul.mubr.f32.gmra.mrb[0].mxu0 %v2108
  %v2245 = vpop.f32.mrb[0].mxu0
  %v2246 = vadd.f32 %v2157, %v2245
  %v2247 = vpop.f32.mrb[0].mxu0
  %2248 = vmatprep.mubr.f32.mxu0 0.0
  %2249 = vmatmul.mubr.f32.gmra.mrb[0].mxu0 %v2109
  %v2250 = vpop.f32.mrb[0].mxu0
  %v2251 = vadd.f32 %v2157, %v2250
  %v2252 = vpop.f32.mrb[0].mxu0
  %2253 = vmatprep.mubr.f32.mxu0 0.0
  %2254 = vmatmul.mubr.f32.gmra.mrb[0].mxu0 %v2110
  %v2255 = vpop.f32.mrb[0].mxu0
  %v2256 = vadd.f32 %v2157, %v2255
  %v2257 = vpop.f32.mrb[0].mxu0
  %2258 = vmatprep.mubr.f32.mxu0 0.0
  %2259 = vmatmul.mubr.f32.gmra.mrb[0].mxu0 %v2111
  %v2260 = vpop.f32.mrb[0].mxu0
  %v2261 = vadd.f32 %v2157, %v2260
  %v2262 = vpop.f32.mrb[0].mxu0
  %2263 = vmatprep.mubr.f32.mxu0 0.0
  %2264 = vmatmul.mubr.f32.gmra.mrb[0].mxu0 %v2112
  %v2265 = vpop.f32.mrb[0].mxu0
  %v2266 = vadd.f32 %v2157, %v2265
  %v2267 = vpop.f32.mrb[0].mxu0
  %2268 = vmatprep.mubr.f32.mxu0 0.0
  %2269 = vmatmul.mubr.f32.gmra.mrb[0].mxu0 %v2113
  %v2270 = vpop.f32.mrb[0].mxu0
  %v2271 = vadd.f32 %v2157, %v2270
  %v2272 = vpop.f32.mrb[0].mxu0
  %2273 = vmatprep.mubr.f32.mxu0 0.0
  %2274 = vmatmul.mubr.f32.gmra.mrb[0].mxu0 %v2114
  %v2275 = vpop.f32.mrb[0].mxu0
  %v2276 = vadd.f32 %v2157, %v2275
  %v2277 = vpop.f32.mrb[0].mxu0
  %2278 = vmatprep.mubr.f32.mxu0 0.0
  %2279 = vmatmul.mubr.f32.gmra.mrb[0].mxu0 %v2115
  %v2280 = vpop.f32.mrb[0].mxu0
  %v2281 = vadd.f32 %v2157, %v2280
  %v2282 = vpop.f32.mrb[0].mxu0
  %2283 = vmatprep.mubr.f32.mxu0 0.0
  %2284 = vmatmul.mubr.f32.gmra.mrb[0].mxu0 %v2116
  %v2285 = vpop.f32.mrb[0].mxu0
  %v2286 = vadd.f32 %v2157, %v2285
  %v2287 = vpop.f32.mrb[0].mxu0
  %2288 = vmatprep.mubr.f32.mxu0 0.0
  %2289 = vmatmul.mubr.f32.gmra.mrb[0].mxu0 %v2117
  %v2290 = vpop.f32.mrb[0].mxu0
  %v2291 = vadd.f32 %v2157, %v2290
  %v2292 = vpop.f32.mrb[0].mxu0
  %2293 = vmatprep.mubr.f32.mxu0 0.0
  %2294 = vmatmul.mubr.f32.gmra.mrb[0].mxu0 %v2118
  %v2295 = vpop.f32.mrb[0].mxu0
  %v2296 = vadd.f32 %v2157, %v2295
  %v2297 = vpop.f32.mrb[0].mxu0
  %2298 = vmatprep.mubr.f32.mxu0 0.0
  %2299 = vmatmul.mubr.f32.gmra.mrb[0].mxu0 %v2119
  %v2300 = vpop.f32.mrb[0].mxu0
  %v2301 = vadd.f32 %v2157, %v2300
  %v2302 = vpop.f32.mrb[0].mxu0
  %2303 = vmatprep.mubr.f32.mxu0 0.0
  %2304 = vmatmul.mubr.f32.gmra.mrb[0].mxu0 %v2120
  %v2305 = vpop.f32.mrb[0].mxu0
  %v2306 = vadd.f32 %v2157, %v2305
  %v2307 = vpop.f32.mrb[0].mxu0
  %2308 = vmatprep.mubr.f32.mxu0 0.0
  %2309 = vmatmul.mubr.f32.gmra.mrb[0].mxu0 %v2121
  %v2310 = vpop.f32.mrb[0].mxu0
  %v2311 = vadd.f32 %v2157, %v2310
  %v2312 = vpop.f32.mrb[0].mxu0
  %2313 = vmatprep.mubr.f32.mxu0 0.0
  %2314 = vmatmul.mubr.f32.gmra.mrb[0].mxu0 %v2122
  %v2315 = vpop.f32.mrb[0].mxu0
  %v2316 = vadd.f32 %v2157, %v2315
  %v2317 = vpop.f32.mrb[0].mxu0
  %2318 = vmatprep.mubr.f32.mxu0 0.0
  %2319 = vmatmul.mubr.f32.gmra.mrb[0].mxu0 %v2123
  %v2320 = vpop.f32.mrb[0].mxu0
  %v2321 = vadd.f32 %v2157, %v2320
  %v2322 = vpop.f32.mrb[0].mxu0
  %2323 = vmatprep.mubr.f32.mxu0 0.0
  %2324 = vmatmul.mubr.f32.gmra.mrb[0].mxu0 %v2124
  %v2325 = vpop.f32.mrb[0].mxu0
  %v2326 = vadd.f32 %v2157, %v2325
  %v2327 = vpop.f32.mrb[0].mxu0
  %2328 = vmatprep.mubr.f32.mxu0 0.0
  %2329 = vmatmul.mubr.f32.gmra.mrb[0].mxu0 %v2125
  %v2330 = vpop.f32.mrb[0].mxu0
  %v2331 = vadd.f32 %v2157, %v2330
  %v2332 = vpop.f32.mrb[0].mxu0
  %2333 = vmatprep.mubr.f32.mxu0 0.0
  %2334 = vmatmul.mubr.f32.gmra.mrb[0].mxu0 %v2126
  %v2335 = vpop.f32.mrb[0].mxu0
  %v2336 = vadd.f32 %v2157, %v2335
  %v2337 = vpop.f32.mrb[0].mxu0
  %2338 = vmatprep.mubr.f32.mxu0 0.0
  %2339 = vmatmul.mubr.f32.gmra.mrb[0].mxu0 %v2127
  %v2340 = vpop.f32.mrb[0].mxu0
  %v2341 = vadd.f32 %v2157, %v2340
  %v2342 = vpop.f32.mrb[0].mxu0
  %2343 = vmatprep.mubr.f32.mxu0 0.0
  %2344 = vmatmul.mubr.f32.gmra.mrb[0].mxu0 %v2128
  %v2345 = vpop.f32.mrb[0].mxu0
  %v2346 = vadd.f32 %v2157, %v2345
  %v2347 = vpop.f32.mrb[0].mxu0
  %2348 = vmatprep.mubr.f32.mxu0 0.0
  %2349 = vmatmul.mubr.f32.gmra.mrb[0].mxu0 %v2129
  %v2350 = vpop.f32.mrb[0].mxu0
  %v2351 = vadd.f32 %v2157, %v2350
  %v2352 = vpop.f32.mrb[0].mxu0
  %2353 = vmatprep.mubr.f32.mxu0 0.0
  %2354 = vmatmul.mubr.f32.gmra.mrb[0].mxu0 %v2130
  %v2355 = vpop.f32.mrb[0].mxu0
  %v2356 = vadd.f32 %v2157, %v2355
  %v2357 = vpop.f32.mrb[0].mxu0
  %2358 = vmatprep.mubr.f32.mxu0 0.0
  %2359 = vmatmul.mubr.f32.gmra.mrb[0].mxu0 %v2131
  %v2360 = vpop.f32.mrb[0].mxu0
  %v2361 = vadd.f32 %v2157, %v2360
  %v2362 = vpop.f32.mrb[0].mxu0
  %2363 = vmatprep.mubr.f32.mxu0 0.0
  %2364 = vmatmul.mubr.f32.gmra.mrb[0].mxu0 %v2132
  %v2365 = vpop.f32.mrb[0].mxu0
  %v2366 = vadd.f32 %v2157, %v2365
  %v2367 = vpop.f32.mrb[0].mxu0
  %2368 = vmatprep.mubr.f32.mxu0 0.0
  %2369 = vmatmul.mubr.f32.gmra.mrb[0].mxu0 %v2133
  %v2370 = vpop.f32.mrb[0].mxu0
  %v2371 = vadd.f32 %v2157, %v2370
  %v2372 = vpop.f32.mrb[0].mxu0
  %2373 = vmatprep.mubr.f32.mxu0 0.0
  %2374 = vmatmul.mubr.f32.gmra.mrb[0].mxu0 %v2134
  %v2375 = vpop.f32.mrb[0].mxu0
  %v2376 = vadd.f32 %v2157, %v2375
  %v2377 = vpop.f32.mrb[0].mxu0
  %2378 = vmatprep.mubr.f32.mxu0 0.0
  %2379 = vmatmul.mubr.f32.gmra.mrb[0].mxu0 %v2135
  %v2380 = vpop.f32.mrb[0].mxu0
  %v2381 = vadd.f32 %v2157, %v2380
  %v2382 = vpop.f32.mrb[0].mxu0
  %2383 = vdwg.mxu0
  %v2384 = vmax.f32 %v2226, 0.0
  %v2385 = vmax.f32 %v2231, 0.0
  %v2386 = vmax.f32 %v2236, 0.0
  %v2387 = vmax.f32 %v2241, 0.0
  %v2388 = vmax.f32 %v2246, 0.0
  %v2389 = vmax.f32 %v2251, 0.0
  %v2390 = vmax.f32 %v2256, 0.0
  %v2391 = vmax.f32 %v2261, 0.0
  %v2392 = vmax.f32 %v2266, 0.0
  %v2393 = vmax.f32 %v2271, 0.0
  %v2394 = vmax.f32 %v2276, 0.0
  %v2395 = vmax.f32 %v2281, 0.0
  %v2396 = vmax.f32 %v2286, 0.0
  %v2397 = vmax.f32 %v2291, 0.0
  %v2398 = vmax.f32 %v2296, 0.0
  %v2399 = vmax.f32 %v2301, 0.0
  %v2400 = vmax.f32 %v2306, 0.0
  %v2401 = vmax.f32 %v2311, 0.0
  %v2402 = vmax.f32 %v2316, 0.0
  %v2403 = vmax.f32 %v2321, 0.0
  %v2404 = vmax.f32 %v2326, 0.0
  %v2405 = vmax.f32 %v2331, 0.0
  %v2406 = vmax.f32 %v2336, 0.0
  %v2407 = vmax.f32 %v2341, 0.0
  %v2408 = vmax.f32 %v2346, 0.0
  %v2409 = vmax.f32 %v2351, 0.0
  %v2410 = vmax.f32 %v2356, 0.0
  %v2411 = vmax.f32 %v2361, 0.0
  %v2412 = vmax.f32 %v2366, 0.0
  %v2413 = vmax.f32 %v2371, 0.0
  %v2414 = vmax.f32 %v2376, 0.0
  %v2415 = vmax.f32 %v2381, 0.0
  %v2416 = vld [vmem:[%s9] sm:$0xff]
  %v2417 = vld [vmem:[%s9 + $0x8] sm:$0xff]
  %v2418 = vld [vmem:[%s9 + $0x10] sm:$0xff]
  %v2419 = vld [vmem:[%s9 + $0x18] sm:$0xff]
  %v2420 = vld [vmem:[%s9 + $0x20] sm:$0xff]
  %v2421 = vld [vmem:[%s9 + $0x28] sm:$0xff]
  %v2422 = vld [vmem:[%s9 + $0x30] sm:$0xff]
  %v2423 = vld [vmem:[%s9 + $0x38] sm:$0xff]
  %v2424 = vld [vmem:[%s9 + $0x40] sm:$0xff]
  %v2425 = vld [vmem:[%s9 + $0x48] sm:$0xff]
  %v2426 = vld [vmem:[%s9 + $0x50] sm:$0xff]
  %v2427 = vld [vmem:[%s9 + $0x58] sm:$0xff]
  %v2428 = vld [vmem:[%s9 + $0x60] sm:$0xff]
  %v2429 = vld [vmem:[%s9 + $0x68] sm:$0xff]
  %v2430 = vld [vmem:[%s9 + $0x70] sm:$0xff]
  %v2431 = vld [vmem:[%s9 + $0x78] sm:$0xff]
  %v2432 = vld [vmem:[%s10] sm:$0x1]
  %v2434 = vlaneseq
  %v2435 = vshrl.u32 %v2434, 7
  %v2436 = vsub.s32 0, %v2435
  %v2437 = vrot.slane %v2432, %v2436
  %2439 = vmatprep.subr.mxu0 0.0
  %2440 = vmatpush1.msra.mxu0 %v2416
  %2441 = vmatprep.subr.mxu0 0.0
  %2442 = vmatpush1.msra.mxu0 %v2417
  %2443 = vmatprep.subr.mxu0 0.0
  %2444 = vmatpush1.msra.mxu0 %v2418
  %2445 = vmatprep.subr.mxu0 0.0
  %2446 = vmatpush1.msra.mxu0 %v2419
  %2447 = vmatprep.subr.mxu0 0.0
  %2448 = vmatpush1.msra.mxu0 %v2420
  %2449 = vmatprep.subr.mxu0 0.0
  %2450 = vmatpush1.msra.mxu0 %v2421
  %2451 = vmatprep.subr.mxu0 0.0
  %2452 = vmatpush1.msra.mxu0 %v2422
  %2453 = vmatprep.subr.mxu0 0.0
  %2454 = vmatpush1.msra.mxu0 %v2423
  %2455 = vmatprep.subr.mxu0 0.0
  %2456 = vmatpush1.msra.mxu0 %v2424
  %2457 = vmatprep.subr.mxu0 0.0
  %2458 = vmatpush1.msra.mxu0 %v2425
  %2459 = vmatprep.subr.mxu0 0.0
  %2460 = vmatpush1.msra.mxu0 %v2426
  %2461 = vmatprep.subr.mxu0 0.0
  %2462 = vmatpush1.msra.mxu0 %v2427
  %2463 = vmatprep.subr.mxu0 0.0
  %2464 = vmatpush1.msra.mxu0 %v2428
  %2465 = vmatprep.subr.mxu0 0.0
  %2466 = vmatpush1.msra.mxu0 %v2429
  %2467 = vmatprep.subr.mxu0 0.0
  %2468 = vmatpush1.msra.mxu0 %v2430
  %2469 = vmatprep.subr.mxu0 0.0
  %2470 = vmatpush1.msra.mxu0 %v2431
  %2471 = vmatprep.subr.mxu0 0.0
  %2472 = vmatpush1.msra.mxu0 0.0
  %2473 = vmatprep.subr.mxu0 0.0
  %2474 = vmatpush1.msra.mxu0 0.0
  %2475 = vmatprep.subr.mxu0 0.0
  %2476 = vmatpush1.msra.mxu0 0.0
  %2477 = vmatprep.subr.mxu0 0.0
  %2478 = vmatpush1.msra.mxu0 0.0
  %2479 = vmatprep.subr.mxu0 0.0
  %2480 = vmatpush1.msra.mxu0 0.0
  %2481 = vmatprep.subr.mxu0 0.0
  %2482 = vmatpush1.msra.mxu0 0.0
  %2483 = vmatprep.subr.mxu0 0.0
  %2484 = vmatpush1.msra.mxu0 0.0
  %2485 = vmatprep.subr.mxu0 0.0
  %2486 = vmatpush1.msra.mxu0 0.0
  %2487 = vmatprep.subr.mxu0 0.0
  %2488 = vmatpush1.msra.mxu0 0.0
  %2489 = vmatprep.subr.mxu0 0.0
  %2490 = vmatpush1.msra.mxu0 0.0
  %2491 = vmatprep.subr.mxu0 0.0
  %2492 = vmatpush1.msra.mxu0 0.0
  %2493 = vmatprep.subr.mxu0 0.0
  %2494 = vmatpush1.msra.mxu0 0.0
  %2495 = vmatprep.subr.mxu0 0.0
  %2496 = vmatpush1.msra.mxu0 0.0
  %2497 = vmatprep.subr.mxu0 0.0
  %2498 = vmatpush1.msra.mxu0 0.0
  %2499 = vmatprep.subr.mxu0 0.0
  %2500 = vmatpush1.msra.mxu0 0.0
  %2501 = vmatprep.subr.mxu0 0.0
  %2502 = vmatpush1.msra.mxu0 0.0
  %2503 = vmatprep.mubr.f32.mxu0 0.0
  %2504 = vmatmul.mubr.f32.gmra.mrb[0].mxu0 %v2384
  %v2505 = vpop.f32.mrb[0].mxu0
  %v2506 = vadd.f32 %v2437, %v2505
  %v2507 = vpop.f32.mrb[0].mxu0
  %2508 = vmatprep.mubr.f32.mxu0 0.0
  %2509 = vmatmul.mubr.f32.gmra.mrb[0].mxu0 %v2385
  %v2510 = vpop.f32.mrb[0].mxu0
  %v2511 = vadd.f32 %v2437, %v2510
  %v2512 = vpop.f32.mrb[0].mxu0
  %2513 = vmatprep.mubr.f32.mxu0 0.0
  %2514 = vmatmul.mubr.f32.gmra.mrb[0].mxu0 %v2386
  %v2515 = vpop.f32.mrb[0].mxu0
  %v2516 = vadd.f32 %v2437, %v2515
  %v2517 = vpop.f32.mrb[0].mxu0
  %2518 = vmatprep.mubr.f32.mxu0 0.0
  %2519 = vmatmul.mubr.f32.gmra.mrb[0].mxu0 %v2387
  %v2520 = vpop.f32.mrb[0].mxu0
  %v2521 = vadd.f32 %v2437, %v2520
  %v2522 = vpop.f32.mrb[0].mxu0
  %2523 = vmatprep.mubr.f32.mxu0 0.0
  %2524 = vmatmul.mubr.f32.gmra.mrb[0].mxu0 %v2388
  %v2525 = vpop.f32.mrb[0].mxu0
  %v2526 = vadd.f32 %v2437, %v2525
  %v2527 = vpop.f32.mrb[0].mxu0
  %2528 = vmatprep.mubr.f32.mxu0 0.0
  %2529 = vmatmul.mubr.f32.gmra.mrb[0].mxu0 %v2389
  %v2530 = vpop.f32.mrb[0].mxu0
  %v2531 = vadd.f32 %v2437, %v2530
  %v2532 = vpop.f32.mrb[0].mxu0
  %2533 = vmatprep.mubr.f32.mxu0 0.0
  %2534 = vmatmul.mubr.f32.gmra.mrb[0].mxu0 %v2390
  %v2535 = vpop.f32.mrb[0].mxu0
  %v2536 = vadd.f32 %v2437, %v2535
  %v2537 = vpop.f32.mrb[0].mxu0
  %2538 = vmatprep.mubr.f32.mxu0 0.0
  %2539 = vmatmul.mubr.f32.gmra.mrb[0].mxu0 %v2391
  %v2540 = vpop.f32.mrb[0].mxu0
  %v2541 = vadd.f32 %v2437, %v2540
  %v2542 = vpop.f32.mrb[0].mxu0
  %2543 = vmatprep.mubr.f32.mxu0 0.0
  %2544 = vmatmul.mubr.f32.gmra.mrb[0].mxu0 %v2392
  %v2545 = vpop.f32.mrb[0].mxu0
  %v2546 = vadd.f32 %v2437, %v2545
  %v2547 = vpop.f32.mrb[0].mxu0
  %2548 = vmatprep.mubr.f32.mxu0 0.0
  %2549 = vmatmul.mubr.f32.gmra.mrb[0].mxu0 %v2393
  %v2550 = vpop.f32.mrb[0].mxu0
  %v2551 = vadd.f32 %v2437, %v2550
  %v2552 = vpop.f32.mrb[0].mxu0
  %2553 = vmatprep.mubr.f32.mxu0 0.0
  %2554 = vmatmul.mubr.f32.gmra.mrb[0].mxu0 %v2394
  %v2555 = vpop.f32.mrb[0].mxu0
  %v2556 = vadd.f32 %v2437, %v2555
  %v2557 = vpop.f32.mrb[0].mxu0
  %2558 = vmatprep.mubr.f32.mxu0 0.0
  %2559 = vmatmul.mubr.f32.gmra.mrb[0].mxu0 %v2395
  %v2560 = vpop.f32.mrb[0].mxu0
  %v2561 = vadd.f32 %v2437, %v2560
  %v2562 = vpop.f32.mrb[0].mxu0
  %2563 = vmatprep.mubr.f32.mxu0 0.0
  %2564 = vmatmul.mubr.f32.gmra.mrb[0].mxu0 %v2396
  %v2565 = vpop.f32.mrb[0].mxu0
  %v2566 = vadd.f32 %v2437, %v2565
  %v2567 = vpop.f32.mrb[0].mxu0
  %2568 = vmatprep.mubr.f32.mxu0 0.0
  %2569 = vmatmul.mubr.f32.gmra.mrb[0].mxu0 %v2397
  %v2570 = vpop.f32.mrb[0].mxu0
  %v2571 = vadd.f32 %v2437, %v2570
  %v2572 = vpop.f32.mrb[0].mxu0
  %2573 = vmatprep.mubr.f32.mxu0 0.0
  %2574 = vmatmul.mubr.f32.gmra.mrb[0].mxu0 %v2398
  %v2575 = vpop.f32.mrb[0].mxu0
  %v2576 = vadd.f32 %v2437, %v2575
  %v2577 = vpop.f32.mrb[0].mxu0
  %2578 = vmatprep.mubr.f32.mxu0 0.0
  %2579 = vmatmul.mubr.f32.gmra.mrb[0].mxu0 %v2399
  %v2580 = vpop.f32.mrb[0].mxu0
  %v2581 = vadd.f32 %v2437, %v2580
  %v2582 = vpop.f32.mrb[0].mxu0
  %2583 = vmatprep.mubr.f32.mxu0 0.0
  %2584 = vmatmul.mubr.f32.gmra.mrb[0].mxu0 %v2400
  %v2585 = vpop.f32.mrb[0].mxu0
  %v2586 = vadd.f32 %v2437, %v2585
  %v2587 = vpop.f32.mrb[0].mxu0
  %2588 = vmatprep.mubr.f32.mxu0 0.0
  %2589 = vmatmul.mubr.f32.gmra.mrb[0].mxu0 %v2401
  %v2590 = vpop.f32.mrb[0].mxu0
  %v2591 = vadd.f32 %v2437, %v2590
  %v2592 = vpop.f32.mrb[0].mxu0
  %2593 = vmatprep.mubr.f32.mxu0 0.0
  %2594 = vmatmul.mubr.f32.gmra.mrb[0].mxu0 %v2402
  %v2595 = vpop.f32.mrb[0].mxu0
  %v2596 = vadd.f32 %v2437, %v2595
  %v2597 = vpop.f32.mrb[0].mxu0
  %2598 = vmatprep.mubr.f32.mxu0 0.0
  %2599 = vmatmul.mubr.f32.gmra.mrb[0].mxu0 %v2403
  %v2600 = vpop.f32.mrb[0].mxu0
  %v2601 = vadd.f32 %v2437, %v2600
  %v2602 = vpop.f32.mrb[0].mxu0
  %2603 = vmatprep.mubr.f32.mxu0 0.0
  %2604 = vmatmul.mubr.f32.gmra.mrb[0].mxu0 %v2404
  %v2605 = vpop.f32.mrb[0].mxu0
  %v2606 = vadd.f32 %v2437, %v2605
  %v2607 = vpop.f32.mrb[0].mxu0
  %2608 = vmatprep.mubr.f32.mxu0 0.0
  %2609 = vmatmul.mubr.f32.gmra.mrb[0].mxu0 %v2405
  %v2610 = vpop.f32.mrb[0].mxu0
  %v2611 = vadd.f32 %v2437, %v2610
  %v2612 = vpop.f32.mrb[0].mxu0
  %2613 = vmatprep.mubr.f32.mxu0 0.0
  %2614 = vmatmul.mubr.f32.gmra.mrb[0].mxu0 %v2406
  %v2615 = vpop.f32.mrb[0].mxu0
  %v2616 = vadd.f32 %v2437, %v2615
  %v2617 = vpop.f32.mrb[0].mxu0
  %2618 = vmatprep.mubr.f32.mxu0 0.0
  %2619 = vmatmul.mubr.f32.gmra.mrb[0].mxu0 %v2407
  %v2620 = vpop.f32.mrb[0].mxu0
  %v2621 = vadd.f32 %v2437, %v2620
  %v2622 = vpop.f32.mrb[0].mxu0
  %2623 = vmatprep.mubr.f32.mxu0 0.0
  %2624 = vmatmul.mubr.f32.gmra.mrb[0].mxu0 %v2408
  %v2625 = vpop.f32.mrb[0].mxu0
  %v2626 = vadd.f32 %v2437, %v2625
  %v2627 = vpop.f32.mrb[0].mxu0
  %2628 = vmatprep.mubr.f32.mxu0 0.0
  %2629 = vmatmul.mubr.f32.gmra.mrb[0].mxu0 %v2409
  %v2630 = vpop.f32.mrb[0].mxu0
  %v2631 = vadd.f32 %v2437, %v2630
  %v2632 = vpop.f32.mrb[0].mxu0
  %2633 = vmatprep.mubr.f32.mxu0 0.0
  %2634 = vmatmul.mubr.f32.gmra.mrb[0].mxu0 %v2410
  %v2635 = vpop.f32.mrb[0].mxu0
  %v2636 = vadd.f32 %v2437, %v2635
  %v2637 = vpop.f32.mrb[0].mxu0
  %2638 = vmatprep.mubr.f32.mxu0 0.0
  %2639 = vmatmul.mubr.f32.gmra.mrb[0].mxu0 %v2411
  %v2640 = vpop.f32.mrb[0].mxu0
  %v2641 = vadd.f32 %v2437, %v2640
  %v2642 = vpop.f32.mrb[0].mxu0
  %2643 = vmatprep.mubr.f32.mxu0 0.0
  %2644 = vmatmul.mubr.f32.gmra.mrb[0].mxu0 %v2412
  %v2645 = vpop.f32.mrb[0].mxu0
  %v2646 = vadd.f32 %v2437, %v2645
  %v2647 = vpop.f32.mrb[0].mxu0
  %2648 = vmatprep.mubr.f32.mxu0 0.0
  %2649 = vmatmul.mubr.f32.gmra.mrb[0].mxu0 %v2413
  %v2650 = vpop.f32.mrb[0].mxu0
  %v2651 = vadd.f32 %v2437, %v2650
  %v2652 = vpop.f32.mrb[0].mxu0
  %2653 = vmatprep.mubr.f32.mxu0 0.0
  %2654 = vmatmul.mubr.f32.gmra.mrb[0].mxu0 %v2414
  %v2655 = vpop.f32.mrb[0].mxu0
  %v2656 = vadd.f32 %v2437, %v2655
  %v2657 = vpop.f32.mrb[0].mxu0
  %2658 = vmatprep.mubr.f32.mxu0 0.0
  %2659 = vmatmul.mubr.f32.gmra.mrb[0].mxu0 %v2415
  %v2660 = vpop.f32.mrb[0].mxu0
  %v2661 = vadd.f32 %v2437, %v2660
  %v2662 = vpop.f32.mrb[0].mxu0
  %2663 = vdwg.mxu0
  %v2664 = vlaneseq
  %v2665 = vand.u32 %v2664, 127
  %vm2666 = vcmp.lt.s32.totalorder %v2665, 3
  %v2667 = vxor.u32 %v2506, 2147483648
  %v2668 = vxor.u32 %v2511, 2147483648
  %v2669 = vxor.u32 %v2516, 2147483648
  %v2670 = vxor.u32 %v2521, 2147483648
  %v2671 = vxor.u32 %v2526, 2147483648
  %v2672 = vxor.u32 %v2531, 2147483648
  %v2673 = vxor.u32 %v2536, 2147483648
  %v2674 = vxor.u32 %v2541, 2147483648
  %v2675 = vxor.u32 %v2546, 2147483648
  %v2676 = vxor.u32 %v2551, 2147483648
  %v2677 = vxor.u32 %v2556, 2147483648
  %v2678 = vxor.u32 %v2561, 2147483648
  %v2679 = vxor.u32 %v2566, 2147483648
  %v2680 = vxor.u32 %v2571, 2147483648
  %v2681 = vxor.u32 %v2576, 2147483648
  %v2682 = vxor.u32 %v2581, 2147483648
  %v2683 = vxor.u32 %v2586, 2147483648
  %v2684 = vxor.u32 %v2591, 2147483648
  %v2685 = vxor.u32 %v2596, 2147483648
  %v2686 = vxor.u32 %v2601, 2147483648
  %v2687 = vxor.u32 %v2606, 2147483648
  %v2688 = vxor.u32 %v2611, 2147483648
  %v2689 = vxor.u32 %v2616, 2147483648
  %v2690 = vxor.u32 %v2621, 2147483648
  %v2691 = vxor.u32 %v2626, 2147483648
  %v2692 = vxor.u32 %v2631, 2147483648
  %v2693 = vxor.u32 %v2636, 2147483648
  %v2694 = vxor.u32 %v2641, 2147483648
  %v2695 = vxor.u32 %v2646, 2147483648
  %v2696 = vxor.u32 %v2651, 2147483648
  %v2697 = vxor.u32 %v2656, 2147483648
  %v2698 = vxor.u32 %v2661, 2147483648
  %v2699 = vmul.f32 %v2667, 1.442695
  %v2700 = vpow.pop %v2699
  %v2701 = vmul.f32 %v2668, 1.442695
  %v2702 = vpow.pop %v2701
  %v2703 = vmul.f32 %v2669, 1.442695
  %v2704 = vpow.pop %v2703
  %v2705 = vmul.f32 %v2670, 1.442695
  %v2706 = vpow.pop %v2705
  %v2707 = vmul.f32 %v2671, 1.442695
  %v2708 = vpow.pop %v2707
  %v2709 = vmul.f32 %v2672, 1.442695
  %v2710 = vpow.pop %v2709
  %v2711 = vmul.f32 %v2673, 1.442695
  %v2712 = vpow.pop %v2711
  %v2713 = vmul.f32 %v2674, 1.442695
  %v2714 = vpow.pop %v2713
  %v2715 = vmul.f32 %v2675, 1.442695
  %v2716 = vpow.pop %v2715
  %v2717 = vmul.f32 %v2676, 1.442695
  %v2718 = vpow.pop %v2717
  %v2719 = vmul.f32 %v2677, 1.442695
  %v2720 = vpow.pop %v2719
  %v2721 = vmul.f32 %v2678, 1.442695
  %v2722 = vpow.pop %v2721
  %v2723 = vmul.f32 %v2679, 1.442695
  %v2724 = vpow.pop %v2723
  %v2725 = vmul.f32 %v2680, 1.442695
  %v2726 = vpow.pop %v2725
  %v2727 = vmul.f32 %v2681, 1.442695
  %v2728 = vpow.pop %v2727
  %v2729 = vmul.f32 %v2682, 1.442695
  %v2730 = vpow.pop %v2729
  %v2731 = vmul.f32 %v2683, 1.442695
  %v2732 = vpow.pop %v2731
  %v2733 = vmul.f32 %v2684, 1.442695
  %v2734 = vpow.pop %v2733
  %v2735 = vmul.f32 %v2685, 1.442695
  %v2736 = vpow.pop %v2735
  %v2737 = vmul.f32 %v2686, 1.442695
  %v2738 = vpow.pop %v2737
  %v2739 = vmul.f32 %v2687, 1.442695
  %v2740 = vpow.pop %v2739
  %v2741 = vmul.f32 %v2688, 1.442695
  %v2742 = vpow.pop %v2741
  %v2743 = vmul.f32 %v2689, 1.442695
  %v2744 = vpow.pop %v2743
  %v2745 = vmul.f32 %v2690, 1.442695
  %v2746 = vpow.pop %v2745
  %v2747 = vmul.f32 %v2691, 1.442695
  %v2748 = vpow.pop %v2747
  %v2749 = vmul.f32 %v2692, 1.442695
  %v2750 = vpow.pop %v2749
  %v2751 = vmul.f32 %v2693, 1.442695
  %v2752 = vpow.pop %v2751
  %v2753 = vmul.f32 %v2694, 1.442695
  %v2754 = vpow.pop %v2753
  %v2755 = vmul.f32 %v2695, 1.442695
  %v2756 = vpow.pop %v2755
  %v2757 = vmul.f32 %v2696, 1.442695
  %v2758 = vpow.pop %v2757
  %v2759 = vmul.f32 %v2697, 1.442695
  %v2760 = vpow.pop %v2759
  %v2761 = vmul.f32 %v2698, 1.442695
  %v2762 = vpow.pop %v2761
  %v2763 = vadd.f32 %v2700, 1.0
  %v2764 = vadd.f32 %v2702, 1.0
  %v2765 = vadd.f32 %v2704, 1.0
  %v2766 = vadd.f32 %v2706, 1.0
  %v2767 = vadd.f32 %v2708, 1.0
  %v2768 = vadd.f32 %v2710, 1.0
  %v2769 = vadd.f32 %v2712, 1.0
  %v2770 = vadd.f32 %v2714, 1.0
  %v2771 = vadd.f32 %v2716, 1.0
  %v2772 = vadd.f32 %v2718, 1.0
  %v2773 = vadd.f32 %v2720, 1.0
  %v2774 = vadd.f32 %v2722, 1.0
  %v2775 = vadd.f32 %v2724, 1.0
  %v2776 = vadd.f32 %v2726, 1.0
  %v2777 = vadd.f32 %v2728, 1.0
  %v2778 = vadd.f32 %v2730, 1.0
  %v2779 = vadd.f32 %v2732, 1.0
  %v2780 = vadd.f32 %v2734, 1.0
  %v2781 = vadd.f32 %v2736, 1.0
  %v2782 = vadd.f32 %v2738, 1.0
  %v2783 = vadd.f32 %v2740, 1.0
  %v2784 = vadd.f32 %v2742, 1.0
  %v2785 = vadd.f32 %v2744, 1.0
  %v2786 = vadd.f32 %v2746, 1.0
  %v2787 = vadd.f32 %v2748, 1.0
  %v2788 = vadd.f32 %v2750, 1.0
  %v2789 = vadd.f32 %v2752, 1.0
  %v2790 = vadd.f32 %v2754, 1.0
  %v2791 = vadd.f32 %v2756, 1.0
  %v2792 = vadd.f32 %v2758, 1.0
  %v2793 = vadd.f32 %v2760, 1.0
  %v2794 = vadd.f32 %v2762, 1.0
  %v2795 = vrcp.pop %v2763
  %v2796 = vmul.f32 1.0, %v2795
  %v2797 = vrcp.pop %v2764
  %v2798 = vmul.f32 1.0, %v2797
  %v2799 = vrcp.pop %v2765
  %v2800 = vmul.f32 1.0, %v2799
  %v2801 = vrcp.pop %v2766
  %v2802 = vmul.f32 1.0, %v2801
  %v2803 = vrcp.pop %v2767
  %v2804 = vmul.f32 1.0, %v2803
  %v2805 = vrcp.pop %v2768
  %v2806 = vmul.f32 1.0, %v2805
  %v2807 = vrcp.pop %v2769
  %v2808 = vmul.f32 1.0, %v2807
  %v2809 = vrcp.pop %v2770
  %v2810 = vmul.f32 1.0, %v2809
  %v2811 = vrcp.pop %v2771
  %v2812 = vmul.f32 1.0, %v2811
  %v2813 = vrcp.pop %v2772
  %v2814 = vmul.f32 1.0, %v2813
  %v2815 = vrcp.pop %v2773
  %v2816 = vmul.f32 1.0, %v2815
  %v2817 = vrcp.pop %v2774
  %v2818 = vmul.f32 1.0, %v2817
  %v2819 = vrcp.pop %v2775
  %v2820 = vmul.f32 1.0, %v2819
  %v2821 = vrcp.pop %v2776
  %v2822 = vmul.f32 1.0, %v2821
  %v2823 = vrcp.pop %v2777
  %v2824 = vmul.f32 1.0, %v2823
  %v2825 = vrcp.pop %v2778
  %v2826 = vmul.f32 1.0, %v2825
  %v2827 = vrcp.pop %v2779
  %v2828 = vmul.f32 1.0, %v2827
  %v2829 = vrcp.pop %v2780
  %v2830 = vmul.f32 1.0, %v2829
  %v2831 = vrcp.pop %v2781
  %v2832 = vmul.f32 1.0, %v2831
  %v2833 = vrcp.pop %v2782
  %v2834 = vmul.f32 1.0, %v2833
  %v2835 = vrcp.pop %v2783
  %v2836 = vmul.f32 1.0, %v2835
  %v2837 = vrcp.pop %v2784
  %v2838 = vmul.f32 1.0, %v2837
  %v2839 = vrcp.pop %v2785
  %v2840 = vmul.f32 1.0, %v2839
  %v2841 = vrcp.pop %v2786
  %v2842 = vmul.f32 1.0, %v2841
  %v2843 = vrcp.pop %v2787
  %v2844 = vmul.f32 1.0, %v2843
  %v2845 = vrcp.pop %v2788
  %v2846 = vmul.f32 1.0, %v2845
  %v2847 = vrcp.pop %v2789
  %v2848 = vmul.f32 1.0, %v2847
  %v2849 = vrcp.pop %v2790
  %v2850 = vmul.f32 1.0, %v2849
  %v2851 = vrcp.pop %v2791
  %v2852 = vmul.f32 1.0, %v2851
  %v2853 = vrcp.pop %v2792
  %v2854 = vmul.f32 1.0, %v2853
  %v2855 = vrcp.pop %v2793
  %v2856 = vmul.f32 1.0, %v2855
  %v2857 = vrcp.pop %v2794
  %v2858 = vmul.f32 1.0, %v2857
  %2860 = vset.pattern.permute.xlu0 64
  %2861 = vperm.xlu0 %2860, %v2384
  %v2862 = vpop.permute.xlu0 %2861
  %2865 = vset.pattern.permute.xlu0 64
  %2866 = vperm.xlu0 %2865, %v2385
  %v2867 = vpop.permute.xlu0 %2866
  %2870 = vset.pattern.permute.xlu0 64
  %2871 = vperm.xlu0 %2870, %v2386
  %v2872 = vpop.permute.xlu0 %2871
  %2875 = vset.pattern.permute.xlu0 64
  %2876 = vperm.xlu0 %2875, %v2387
  %v2877 = vpop.permute.xlu0 %2876
  %2880 = vset.pattern.permute.xlu0 64
  %2881 = vperm.xlu0 %2880, %v2388
  %v2882 = vpop.permute.xlu0 %2881
  %2885 = vset.pattern.permute.xlu0 64
  %2886 = vperm.xlu0 %2885, %v2389
  %v2887 = vpop.permute.xlu0 %2886
  %2890 = vset.pattern.permute.xlu0 64
  %2891 = vperm.xlu0 %2890, %v2390
  %v2892 = vpop.permute.xlu0 %2891
  %2895 = vset.pattern.permute.xlu0 64
  %2896 = vperm.xlu0 %2895, %v2391
  %v2897 = vpop.permute.xlu0 %2896
  %2900 = vset.pattern.permute.xlu0 64
  %2901 = vperm.xlu0 %2900, %v2392
  %v2902 = vpop.permute.xlu0 %2901
  %2905 = vset.pattern.permute.xlu0 64
  %2906 = vperm.xlu0 %2905, %v2393
  %v2907 = vpop.permute.xlu0 %2906
  %2910 = vset.pattern.permute.xlu0 64
  %2911 = vperm.xlu0 %2910, %v2394
  %v2912 = vpop.permute.xlu0 %2911
  %2915 = vset.pattern.permute.xlu0 64
  %2916 = vperm.xlu0 %2915, %v2395
  %v2917 = vpop.permute.xlu0 %2916
  %2920 = vset.pattern.permute.xlu0 64
  %2921 = vperm.xlu0 %2920, %v2396
  %v2922 = vpop.permute.xlu0 %2921
  %2925 = vset.pattern.permute.xlu0 64
  %2926 = vperm.xlu0 %2925, %v2397
  %v2927 = vpop.permute.xlu0 %2926
  %2930 = vset.pattern.permute.xlu0 64
  %2931 = vperm.xlu0 %2930, %v2398
  %v2932 = vpop.permute.xlu0 %2931
  %2935 = vset.pattern.permute.xlu0 64
  %2936 = vperm.xlu0 %2935, %v2399
  %v2937 = vpop.permute.xlu0 %2936
  %2940 = vset.pattern.permute.xlu0 64
  %2941 = vperm.xlu0 %2940, %v2400
  %v2942 = vpop.permute.xlu0 %2941
  %2945 = vset.pattern.permute.xlu0 64
  %2946 = vperm.xlu0 %2945, %v2401
  %v2947 = vpop.permute.xlu0 %2946
  %2950 = vset.pattern.permute.xlu0 64
  %2951 = vperm.xlu0 %2950, %v2402
  %v2952 = vpop.permute.xlu0 %2951
  %2955 = vset.pattern.permute.xlu0 64
  %2956 = vperm.xlu0 %2955, %v2403
  %v2957 = vpop.permute.xlu0 %2956
  %2960 = vset.pattern.permute.xlu0 64
  %2961 = vperm.xlu0 %2960, %v2404
  %v2962 = vpop.permute.xlu0 %2961
  %2965 = vset.pattern.permute.xlu0 64
  %2966 = vperm.xlu0 %2965, %v2405
  %v2967 = vpop.permute.xlu0 %2966
  %2970 = vset.pattern.permute.xlu0 64
  %2971 = vperm.xlu0 %2970, %v2406
  %v2972 = vpop.permute.xlu0 %2971
  %2975 = vset.pattern.permute.xlu0 64
  %2976 = vperm.xlu0 %2975, %v2407
  %v2977 = vpop.permute.xlu0 %2976
  %2980 = vset.pattern.permute.xlu0 64
  %2981 = vperm.xlu0 %2980, %v2408
  %v2982 = vpop.permute.xlu0 %2981
  %2985 = vset.pattern.permute.xlu0 64
  %2986 = vperm.xlu0 %2985, %v2409
  %v2987 = vpop.permute.xlu0 %2986
  %2990 = vset.pattern.permute.xlu0 64
  %2991 = vperm.xlu0 %2990, %v2410
  %v2992 = vpop.permute.xlu0 %2991
  %2995 = vset.pattern.permute.xlu0 64
  %2996 = vperm.xlu0 %2995, %v2411
  %v2997 = vpop.permute.xlu0 %2996
  %3000 = vset.pattern.permute.xlu0 64
  %3001 = vperm.xlu0 %3000, %v2412
  %v3002 = vpop.permute.xlu0 %3001
  %3005 = vset.pattern.permute.xlu0 64
  %3006 = vperm.xlu0 %3005, %v2413
  %v3007 = vpop.permute.xlu0 %3006
  %3010 = vset.pattern.permute.xlu0 64
  %3011 = vperm.xlu0 %3010, %v2414
  %v3012 = vpop.permute.xlu0 %3011
  %3015 = vset.pattern.permute.xlu0 64
  %3016 = vperm.xlu0 %3015, %v2415
  %v3017 = vpop.permute.xlu0 %3016
  %v3019 = vsel %vm2666, %v2796, %v2862
  %v3020 = vsel %vm2666, %v2798, %v2867
  %v3021 = vsel %vm2666, %v2800, %v2872
  %v3022 = vsel %vm2666, %v2802, %v2877
  %v3023 = vsel %vm2666, %v2804, %v2882
  %v3024 = vsel %vm2666, %v2806, %v2887
  %v3025 = vsel %vm2666, %v2808, %v2892
  %v3026 = vsel %vm2666, %v2810, %v2897
  %v3027 = vsel %vm2666, %v2812, %v2902
  %v3028 = vsel %vm2666, %v2814, %v2907
  %v3029 = vsel %vm2666, %v2816, %v2912
  %v3030 = vsel %vm2666, %v2818, %v2917
  %v3031 = vsel %vm2666, %v2820, %v2922
  %v3032 = vsel %vm2666, %v2822, %v2927
  %v3033 = vsel %vm2666, %v2824, %v2932
  %v3034 = vsel %vm2666, %v2826, %v2937
  %v3035 = vsel %vm2666, %v2828, %v2942
  %v3036 = vsel %vm2666, %v2830, %v2947
  %v3037 = vsel %vm2666, %v2832, %v2952
  %v3038 = vsel %vm2666, %v2834, %v2957
  %v3039 = vsel %vm2666, %v2836, %v2962
  %v3040 = vsel %vm2666, %v2838, %v2967
  %v3041 = vsel %vm2666, %v2840, %v2972
  %v3042 = vsel %vm2666, %v2842, %v2977
  %v3043 = vsel %vm2666, %v2844, %v2982
  %v3044 = vsel %vm2666, %v2846, %v2987
  %v3045 = vsel %vm2666, %v2848, %v2992
  %v3046 = vsel %vm2666, %v2850, %v2997
  %v3047 = vsel %vm2666, %v2852, %v3002
  %v3048 = vsel %vm2666, %v2854, %v3007
  %v3049 = vsel %vm2666, %v2856, %v3012
  %v3050 = vsel %vm2666, %v2858, %v3017
  %vm3051 = vcmask 31744
  %3052 = vst.msk [vmem:[%s11] sm:$0xff] %vm3051, %v3019
  %3053 = vst.msk [vmem:[%s11 + $0x8] sm:$0xff] %vm3051, %v3020
  %3054 = vst.msk [vmem:[%s11 + $0x10] sm:$0xff] %vm3051, %v3021
  %3055 = vst.msk [vmem:[%s11 + $0x18] sm:$0xff] %vm3051, %v3022
  %3056 = vst.msk [vmem:[%s11 + $0x20] sm:$0xff] %vm3051, %v3023
  %3057 = vst.msk [vmem:[%s11 + $0x28] sm:$0xff] %vm3051, %v3024
  %3058 = vst.msk [vmem:[%s11 + $0x30] sm:$0xff] %vm3051, %v3025
  %3059 = vst.msk [vmem:[%s11 + $0x38] sm:$0xff] %vm3051, %v3026
  %3060 = vst.msk [vmem:[%s11 + $0x40] sm:$0xff] %vm3051, %v3027
  %3061 = vst.msk [vmem:[%s11 + $0x48] sm:$0xff] %vm3051, %v3028
  %3062 = vst.msk [vmem:[%s11 + $0x50] sm:$0xff] %vm3051, %v3029
  %3063 = vst.msk [vmem:[%s11 + $0x58] sm:$0xff] %vm3051, %v3030
  %3064 = vst.msk [vmem:[%s11 + $0x60] sm:$0xff] %vm3051, %v3031
  %3065 = vst.msk [vmem:[%s11 + $0x68] sm:$0xff] %vm3051, %v3032
  %3066 = vst.msk [vmem:[%s11 + $0x70] sm:$0xff] %vm3051, %v3033
  %3067 = vst.msk [vmem:[%s11 + $0x78] sm:$0xff] %vm3051, %v3034
  %3068 = vst.msk [vmem:[%s11 + $0x80] sm:$0xff] %vm3051, %v3035
  %3069 = vst.msk [vmem:[%s11 + $0x88] sm:$0xff] %vm3051, %v3036
  %3070 = vst.msk [vmem:[%s11 + $0x90] sm:$0xff] %vm3051, %v3037
  %3071 = vst.msk [vmem:[%s11 + $0x98] sm:$0xff] %vm3051, %v3038
  %3072 = vst.msk [vmem:[%s11 + $0xa0] sm:$0xff] %vm3051, %v3039
  %3073 = vst.msk [vmem:[%s11 + $0xa8] sm:$0xff] %vm3051, %v3040
  %3074 = vst.msk [vmem:[%s11 + $0xb0] sm:$0xff] %vm3051, %v3041
  %3075 = vst.msk [vmem:[%s11 + $0xb8] sm:$0xff] %vm3051, %v3042
  %3076 = vst.msk [vmem:[%s11 + $0xc0] sm:$0xff] %vm3051, %v3043
  %3077 = vst.msk [vmem:[%s11 + $0xc8] sm:$0xff] %vm3051, %v3044
  %3078 = vst.msk [vmem:[%s11 + $0xd0] sm:$0xff] %vm3051, %v3045
  %3079 = vst.msk [vmem:[%s11 + $0xd8] sm:$0xff] %vm3051, %v3046
  %3080 = vst.msk [vmem:[%s11 + $0xe0] sm:$0xff] %vm3051, %v3047
  %3081 = vst.msk [vmem:[%s11 + $0xe8] sm:$0xff] %vm3051, %v3048
  %3082 = vst.msk [vmem:[%s11 + $0xf0] sm:$0xff] %vm3051, %v3049
  %3083 = vst.msk [vmem:[%s11 + $0xf8] sm:$0xff] %vm3051, %v3050
  // Predicated region
  $region46: #{tpu_custom_call.1} parent=0 // pred_check
    _
  $region47: #{tpu_custom_call.1} parent=0 // pred_check_branch
    %3085 = sbr.rel (0) target = $region49
  $region48: #{tpu_custom_call.1} parent=0 // pred_region
    _
  $region49: #{tpu_custom_call.1} parent=0 // pred_fallthru
    _
  // Predicated region
  $region50: #{tpu_custom_call.1} parent=0 // pred_check
    _
  $region51: #{tpu_custom_call.1} parent=0 // pred_check_branch
    %3087 = sbr.rel (0) target = $region53
  $region52: #{tpu_custom_call.1} parent=0 // pred_region
    _
  $region53: #{tpu_custom_call.1} parent=0 // pred_fallthru
    _

</llo_original>
